<compile_context>
chip_gen: v7x
topology: tpu7x:2x2x1
jax: 0.10.0
libtpu: 0.0.40
codegen_flags: <defaults>
</compile_context>

<pallas_src>
import jax
import jax.numpy as jnp
from jax.experimental import pallas as pl
from jax.experimental.pallas import tpu as pltpu

INPUT_SIZE = 784
HIDDEN_SIZE = 500
NUM_CLASSES = 50

# Lane-aligned (multiple-of-128) padded dims for the matmul N dims.
HID_PAD = 512   # 500 -> 512
CLS_PAD = 128   # 50  -> 128


def _round_up(x, m):
    return (x + m - 1) // m * m


def _choose_batch_tile(B, block_b):
    """Batch tile: power-of-two multiple of 16 (8 for tiny B), <= block_b,
    low padding waste, and >= 2 grid steps for large batches (v7x dual TC)."""
    if B <= 16:
        return _round_up(B, 8)
    cand = 16
    t = 16
    allowance = max(16, B // 8)           # tolerate <= ~12.5% padded rows
    while t <= block_b:
        if _round_up(B, t) - B <= allowance:
            cand = t
        t *= 2
    # Keep at least 2 grid steps for large batches so both v7x cores get work.
    if B >= 512 and pl.cdiv(B, cand) < 2:
        cand = max(16, cand // 2)
    return cand


def mlp_kernel(x_ref, w1_ref, b1_ref, w2_ref, b2_ref, o_ref):
    # Cast activations to bf16 in-kernel (VPU filler hidden under MXU work).
    x = x_ref[...].astype(jnp.bfloat16)
    # fc1: bf16 x bf16 -> f32 accumulate on the MXU
    h = jnp.dot(x, w1_ref[...], preferred_element_type=jnp.float32)
    # bias + ReLU on the VPU
    h = jnp.maximum(h + b1_ref[...], 0.0)
    # fc2: cast hidden back to bf16 for the MXU, f32 accumulate
    out = jnp.dot(h.astype(w2_ref.dtype), w2_ref[...],
                  preferred_element_type=jnp.float32)
    o_ref[...] = (out + b2_ref[...]).astype(o_ref.dtype)


def neural_net_forward(x, w1p, b1p, w2p, b2p, *, block_b=512):
    """x: (B, INPUT_SIZE) f32; padded bf16/f32 params from prepare_params()."""
    B = x.shape[0]
    tb = _choose_batch_tile(B, block_b)
    steps = pl.cdiv(B, tb)
    grid = (steps,)

    # Scheduling hint for XLA (no wrapper pad pass anymore -> honest byte count).
    b_work = steps * tb
    flops = 2 * b_work * (INPUT_SIZE * HID_PAD + HID_PAD * CLS_PAD)
    bytes_accessed = (B * INPUT_SIZE * 4            # x (f32)
                      + INPUT_SIZE * HID_PAD * 2    # w1 (bf16)
                      + HID_PAD * 4                 # b1 (f32)
                      + HID_PAD * CLS_PAD * 2       # w2 (bf16)
                      + CLS_PAD * 4                 # b2 (f32)
                      + B * CLS_PAD * 4)            # out (f32)

    # Double-buffered tiles + double-buffered (small) resident weights.
    vmem_bytes = (2 * (tb * INPUT_SIZE * 4 + tb * CLS_PAD * 4)
                  + 2 * (INPUT_SIZE * HID_PAD * 2 + HID_PAD * 4
                         + HID_PAD * CLS_PAD * 2 + CLS_PAD * 4))
    # Only raise the scoped-VMEM limit when an oversized tile actually needs it
    # (v5e default scoped limit is 16 MiB); default tiles stay well under it.
    vmem_limit = int(vmem_bytes * 1.5) if vmem_bytes > (12 << 20) else None

    out_p = pl.pallas_call(
        mlp_kernel,
        out_shape=jax.ShapeDtypeStruct((B, CLS_PAD), jnp.float32),
        grid=grid,
        in_specs=[
            pl.BlockSpec((tb, INPUT_SIZE), lambda i: (i, 0)),       # x tile (f32)
            pl.BlockSpec((INPUT_SIZE, HID_PAD), lambda i: (0, 0)),  # w1 (resident)
            pl.BlockSpec((1, HID_PAD), lambda i: (0, 0)),           # b1 (resident)
            pl.BlockSpec((HID_PAD, CLS_PAD), lambda i: (0, 0)),     # w2 (resident)
            pl.BlockSpec((1, CLS_PAD), lambda i: (0, 0)),           # b2 (resident)
        ],
        out_specs=pl.BlockSpec((tb, CLS_PAD), lambda i: (i, 0)),
        compiler_params=pltpu.CompilerParams(
            dimension_semantics=("parallel",),
            vmem_limit_bytes=vmem_limit),
        cost_estimate=pl.CostEstimate(
            flops=flops, transcendentals=0, bytes_accessed=bytes_accessed),
    )(x, w1p, b1p, w2p, b2p)

    # Slice away class padding (padded class columns are exactly zero).
    return out_p[:, :NUM_CLASSES]


def init_params(key):
    # torch.nn.Linear default init: U(-1/sqrt(fan_in), 1/sqrt(fan_in)).
    k1, k2, k3, k4 = jax.random.split(key, 4)
    bound1 = 1.0 / jnp.sqrt(jnp.float32(INPUT_SIZE))
    bound2 = 1.0 / jnp.sqrt(jnp.float32(HIDDEN_SIZE))
    w1 = jax.random.uniform(k1, (INPUT_SIZE, HIDDEN_SIZE), jnp.float32,
                            minval=-bound1, maxval=bound1)
    b1 = jax.random.uniform(k2, (HIDDEN_SIZE,), jnp.float32,
                            minval=-bound1, maxval=bound1)
    w2 = jax.random.uniform(k3, (HIDDEN_SIZE, NUM_CLASSES), jnp.float32,
                            minval=-bound2, maxval=bound2)
    b2 = jax.random.uniform(k4, (NUM_CLASSES,), jnp.float32,
                            minval=-bound2, maxval=bound2)
    return w1, b1, w2, b2


def prepare_params(w1, b1, w2, b2):
    """One-time: zero-pad N dims to lane multiples; weights bf16, biases f32 (1, N)."""
    w1p = jnp.zeros((INPUT_SIZE, HID_PAD), jnp.bfloat16)
    w1p = w1p.at[:, :HIDDEN_SIZE].set(w1.astype(jnp.bfloat16))
    b1p = jnp.zeros((1, HID_PAD), jnp.float32).at[0, :HIDDEN_SIZE].set(b1)
    w2p = jnp.zeros((HID_PAD, CLS_PAD), jnp.bfloat16)
    w2p = w2p.at[:HIDDEN_SIZE, :NUM_CLASSES].set(w2.astype(jnp.bfloat16))
    b2p = jnp.zeros((1, CLS_PAD), jnp.float32).at[0, :NUM_CLASSES].set(b2)
    return w1p, b1p, w2p, b2p


if __name__ == "__main__":
    key = jax.random.PRNGKey(0)
    kx, kp = jax.random.split(key)
    batch = 64
    x = jax.random.normal(kx, (batch, INPUT_SIZE), jnp.float32)
    w1, b1, w2, b2 = init_params(kp)
    w1p, b1p, w2p, b2p = prepare_params(w1, b1, w2, b2)

    out = neural_net_forward(x, w1p, b1p, w2p, b2p)
    out = jax.block_until_ready(out)

    # Pure-JAX reference with the same bf16-quantized operands (f32 math).
    xb = x.astype(jnp.bfloat16).astype(jnp.float32)
    w1b = w1.astype(jnp.bfloat16).astype(jnp.float32)
    w2b = w2.astype(jnp.bfloat16).astype(jnp.float32)
    h = jnp.maximum(xb @ w1b + b1[None, :], 0.0)
    ref = h.astype(jnp.bfloat16).astype(jnp.float32) @ w2b + b2[None, :]

    assert out.shape == (batch, NUM_CLASSES)
    assert jnp.allclose(out, ref, atol=2e-2, rtol=2e-2), \
        float(jnp.max(jnp.abs(out - ref)))

    print("KERNEL_OK")
</pallas_src>

<mosaic_0001>
module attributes {stable_mosaic.version = 11 : i64} {
  func.func @mlp_kernel(%arg0: i32, %arg1: memref<64x784xf32, #tpu.memory_space<vmem>>, %arg2: memref<784x512xbf16, #tpu.memory_space<vmem>>, %arg3: memref<1x512xf32, #tpu.memory_space<vmem>>, %arg4: memref<512x128xbf16, #tpu.memory_space<vmem>>, %arg5: memref<1x128xf32, #tpu.memory_space<vmem>>, %arg6: memref<64x128xf32, #tpu.memory_space<vmem>>) attributes {dimension_semantics = [#tpu.dimension_semantics<parallel>], iteration_bounds = array<i64: 1>, scalar_prefetch = 0 : i64, scratch_operands = 0 : i64, tpu.core_type = #tpu.core_type<tc>, window_params = [{transform_indices = @transform_0, window_bounds = array<i64: 64, 784>}, {pipeline_mode = #tpu.pipeline_mode<synchronous>, transform_indices = @transform_1, window_bounds = array<i64: 784, 512>}, {pipeline_mode = #tpu.pipeline_mode<synchronous>, transform_indices = @transform_2, window_bounds = array<i64: 1, 512>}, {pipeline_mode = #tpu.pipeline_mode<synchronous>, transform_indices = @transform_3, window_bounds = array<i64: 512, 128>}, {pipeline_mode = #tpu.pipeline_mode<synchronous>, transform_indices = @transform_4, window_bounds = array<i64: 1, 128>}, {transform_indices = @transform_5, window_bounds = array<i64: 64, 128>}]} {
    %c0 = arith.constant 0 : index
    %c0_0 = arith.constant 0 : index
    %0 = vector.load %arg1[%c0, %c0_0] : memref<64x784xf32, #tpu.memory_space<vmem>>, vector<64x784xf32>
    %1 = arith.truncf %0 : vector<64x784xf32> to vector<64x784xbf16>
    %c0_1 = arith.constant 0 : index
    %c0_2 = arith.constant 0 : index
    %2 = vector.load %arg2[%c0_1, %c0_2] : memref<784x512xbf16, #tpu.memory_space<vmem>>, vector<784x512xbf16>
    %cst = arith.constant dense<0.000000e+00> : vector<64x512xf32>
    %3 = tpu.matmul %1, %2, %cst {dimension_numbers = #tpu.dot_dimension_numbers<[1], [0], [0], [1], [0, 0, 1, 1], [], []>} : vector<64x784xbf16>, vector<784x512xbf16>, vector<64x512xf32> -> vector<64x512xf32>
    %c0_3 = arith.constant 0 : index
    %c0_4 = arith.constant 0 : index
    %4 = vector.load %arg3[%c0_3, %c0_4] : memref<1x512xf32, #tpu.memory_space<vmem>>, vector<1x512xf32>
    %5 = vector.broadcast %4 : vector<1x512xf32> to vector<64x512xf32>
    %6 = arith.addf %3, %5 : vector<64x512xf32>
    %cst_5 = arith.constant 0.000000e+00 : f32
    %7 = vector.broadcast %cst_5 : f32 to vector<64x512xf32>
    %8 = arith.maximumf %6, %7 : vector<64x512xf32>
    %9 = arith.truncf %8 : vector<64x512xf32> to vector<64x512xbf16>
    %c0_6 = arith.constant 0 : index
    %c0_7 = arith.constant 0 : index
    %10 = vector.load %arg4[%c0_6, %c0_7] : memref<512x128xbf16, #tpu.memory_space<vmem>>, vector<512x128xbf16>
    %cst_8 = arith.constant dense<0.000000e+00> : vector<64x128xf32>
    %11 = tpu.matmul %9, %10, %cst_8 {dimension_numbers = #tpu.dot_dimension_numbers<[1], [0], [0], [1], [0, 0, 1, 1], [], []>} : vector<64x512xbf16>, vector<512x128xbf16>, vector<64x128xf32> -> vector<64x128xf32>
    %c0_9 = arith.constant 0 : index
    %c0_10 = arith.constant 0 : index
    %12 = vector.load %arg5[%c0_9, %c0_10] : memref<1x128xf32, #tpu.memory_space<vmem>>, vector<1x128xf32>
    %13 = vector.broadcast %12 : vector<1x128xf32> to vector<64x128xf32>
    %14 = arith.addf %11, %13 : vector<64x128xf32>
    %c0_11 = arith.constant 0 : index
    %c0_12 = arith.constant 0 : index
    %15 = vector.load %arg6[%c0_11, %c0_12] : memref<64x128xf32, #tpu.memory_space<vmem>>, vector<64x128xf32>
    tpu.vector_store %arg6[%c0_11, %c0_12], %14 {strides = array<i32>} : memref<64x128xf32, #tpu.memory_space<vmem>>, vector<64x128xf32>,
    return
  }
  func.func @transform_0(%arg0: i32) -> (i32, i32) {
    %c0_i32 = arith.constant 0 : i32
    %c0_i32_0 = arith.constant 0 : i32
    return %arg0, %c0_i32 : i32, i32
  }
  func.func @transform_1(%arg0: i32) -> (i32, i32) {
    %c0_i32 = arith.constant 0 : i32
    %c0_i32_0 = arith.constant 0 : i32
    %c0_i32_1 = arith.constant 0 : i32
    return %c0_i32, %c0_i32_0 : i32, i32
  }
  func.func @transform_2(%arg0: i32) -> (i32, i32) {
    %c0_i32 = arith.constant 0 : i32
    %c0_i32_0 = arith.constant 0 : i32
    %c0_i32_1 = arith.constant 0 : i32
    return %c0_i32, %c0_i32_0 : i32, i32
  }
  func.func @transform_3(%arg0: i32) -> (i32, i32) {
    %c0_i32 = arith.constant 0 : i32
    %c0_i32_0 = arith.constant 0 : i32
    %c0_i32_1 = arith.constant 0 : i32
    return %c0_i32, %c0_i32_0 : i32, i32
  }
  func.func @transform_4(%arg0: i32) -> (i32, i32) {
    %c0_i32 = arith.constant 0 : i32
    %c0_i32_0 = arith.constant 0 : i32
    %c0_i32_1 = arith.constant 0 : i32
    return %c0_i32, %c0_i32_0 : i32, i32
  }
  func.func @transform_5(%arg0: i32) -> (i32, i32) {
    %c0_i32 = arith.constant 0 : i32
    %c0_i32_0 = arith.constant 0 : i32
    return %arg0, %c0_i32 : i32, i32
  }
}

</mosaic_0001>

<llo_original>
// kernel: tpu_custom_call.1
$region0: #{tpu_custom_call.1}
  #allocation0 [shape = 'u32[]', space=smem, size = 0x4, offset = 0x4, fixed_abs, tag = 'smem constant byte address 0x4 - core index']
  #allocation1 [shape = 'u32[144,128]{1,0:T(1,128)}', space=vmem, size = 0x12000, scoped, tag = 'internal scratch']
  %s0 = inlined_call_operand.hbm [shape: f32[64,784], index: 0, kind: input, shape index: {}]
  %s1 = inlined_call_operand.hbm [shape: bf16[784,512], index: 1, kind: input, shape index: {}]
  %s2 = inlined_call_operand.vmem [shape: f32[1,512], index: 2, kind: input, shape index: {}]
  %s3 = inlined_call_operand.hbm [shape: bf16[512,128], index: 3, kind: input, shape index: {}]
  %s4 = inlined_call_operand.vmem [shape: f32[1,128], index: 4, kind: input, shape index: {}]
  %s5 = inlined_call_operand.hbm [shape: f32[64,128], index: 5, kind: output, shape index: {}]
  %s6 = sld [smem:[#allocation0]]
  $region42: #{tpu_custom_call.1} parent=0
    _
  %s8 = ssub.s32 1, %s6
  %s9 = scalar_select 0, %s8, %s6
  $region1: #{tpu_custom_call.1} parent=0
    #allocation2 [shape = 'u8[229376]{0}', space=vmem, size = 0x38000, scoped, tag = 'input window, operand 0, single buffered']
    #allocation3 [shape = 's32[1]{0}', space=sflag, size = 0x4, scoped, tag = 'scoped memory for tpu_custom_call.1']
    #allocation4 [shape = 's32[1]{0}', space=sflag, size = 0x4, scoped, tag = 'scoped memory for tpu_custom_call.1']
    #allocation5 [shape = 'u8[802816]{0}', space=vmem, size = 0xc4000, scoped, tag = 'input window, operand 1, single buffered']
    #allocation6 [shape = 's32[1]{0}', space=sflag, size = 0x4, scoped, tag = 'scoped memory for tpu_custom_call.1']
    #allocation7 [shape = 'u8[131072]{0}', space=vmem, size = 0x20000, scoped, tag = 'input window, operand 3, single buffered']
    #allocation8 [shape = 'u8[32768]{0}', space=vmem, size = 0x8000, scoped, tag = 'output window, operand 0, single buffered']
    %10 = vsyncpa [#allocation3], 0
    %11 = vsyncpa [#allocation6], 0
    %12 = vsyncpa [#allocation4], 0
    // Predicated region
    $region2: #{tpu_custom_call.1} parent=1 // pred_check
      _
    $region3: #{tpu_custom_call.1} parent=1 // pred_check_branch
      %14 = sbr.rel (0) target = $region5
    $region4: #{tpu_custom_call.1} parent=1 // pred_region
      %s16 = ssub.s32 7168, 7168
      %17 = vsyncadd [#allocation3], %s16
      %s18 = sshll.u32 [#allocation2], 4
      %s19 = int_to_ptr.vmem [resolvable:$true] %s18
      %24 = dma.hbm_to_vmem [thread:$0]  %s0, 7168, %s19, [#allocation3], 896, 896, 56
    $region5: #{tpu_custom_call.1} parent=1 // pred_fallthru
      _
    // Predicated region
    $region6: #{tpu_custom_call.1} parent=1 // pred_check
      _
    $region7: #{tpu_custom_call.1} parent=1 // pred_check_branch
      %26 = sbr.rel (0) target = $region9
    $region8: #{tpu_custom_call.1} parent=1 // pred_region
      %s28 = ssub.s32 25088, 25088
      %29 = vsyncadd [#allocation6], %s28
      %s30 = sshll.u32 [#allocation5], 4
      %s31 = int_to_ptr.vmem [resolvable:$true] %s30
      %36 = dma.hbm_to_vmem [thread:$0]  %s1, 25088, %s31, [#allocation6], 256, 256, 16
    $region9: #{tpu_custom_call.1} parent=1 // pred_fallthru
      _
    // Predicated region
    $region10: #{tpu_custom_call.1} parent=1 // pred_check
      _
    $region11: #{tpu_custom_call.1} parent=1 // pred_check_branch
      %38 = sbr.rel (0) target = $region13
    $region12: #{tpu_custom_call.1} parent=1 // pred_region
      _
    $region13: #{tpu_custom_call.1} parent=1 // pred_fallthru
      _
    // Predicated region
    $region14: #{tpu_custom_call.1} parent=1 // pred_check
      _
    $region15: #{tpu_custom_call.1} parent=1 // pred_check_branch
      %40 = sbr.rel (0) target = $region17
    $region16: #{tpu_custom_call.1} parent=1 // pred_region
      %s42 = ssub.s32 4096, 4096
      %43 = vsyncadd [#allocation6], %s42
      %s44 = sshll.u32 [#allocation7], 4
      %s45 = int_to_ptr.vmem [resolvable:$true] %s44
      %50 = dma.hbm_to_vmem [thread:$0]  %s3, 4096, %s45, [#allocation6], 64, 64, 4
    $region17: #{tpu_custom_call.1} parent=1 // pred_fallthru
      _
    // Predicated region
    $region18: #{tpu_custom_call.1} parent=1 // pred_check
      _
    $region19: #{tpu_custom_call.1} parent=1 // pred_check_branch
      %52 = sbr.rel (0) target = $region21
    $region20: #{tpu_custom_call.1} parent=1 // pred_region
      _
    $region21: #{tpu_custom_call.1} parent=1 // pred_fallthru
      _
    // Predicated region
    $region22: #{tpu_custom_call.1} parent=1 // pred_check
      _
    $region23: #{tpu_custom_call.1} parent=1 // pred_check_branch
      %54 = sbr.rel (0) target = $region25
    $region24: #{tpu_custom_call.1} parent=1 // pred_region
      %55 = dma.done [#allocation3], 7168
    $region25: #{tpu_custom_call.1} parent=1 // pred_fallthru
      _
    // Predicated region
    $region26: #{tpu_custom_call.1} parent=1 // pred_check
      _
    $region27: #{tpu_custom_call.1} parent=1 // pred_check_branch
      %57 = sbr.rel (0) target = $region29
    $region28: #{tpu_custom_call.1} parent=1 // pred_region
      %58 = dma.done [#allocation6], 25088
    $region29: #{tpu_custom_call.1} parent=1 // pred_fallthru
      _
    // Predicated region
    $region30: #{tpu_custom_call.1} parent=1 // pred_check
      _
    $region31: #{tpu_custom_call.1} parent=1 // pred_check_branch
      %60 = sbr.rel (0) target = $region33
    $region32: #{tpu_custom_call.1} parent=1 // pred_region
      %61 = dma.done [#allocation6], 4096
    $region33: #{tpu_custom_call.1} parent=1 // pred_fallthru
      _
    %v63 = vld [vmem:[#allocation2] sm:$0xff]
    %v64 = vld [vmem:[#allocation2 + $0x8] sm:$0xff]
    %v65 = vld [vmem:[#allocation2 + $0x10] sm:$0xff]
    %v66 = vld [vmem:[#allocation2 + $0x18] sm:$0xff]
    %v67 = vld [vmem:[#allocation2 + $0x20] sm:$0xff]
    %v68 = vld [vmem:[#allocation2 + $0x28] sm:$0xff]
    %v69 = vld [vmem:[#allocation2 + $0x30] sm:$0xff]
    %v70 = vld [vmem:[#allocation2 + $0x38] sm:$0xff]
    %v71 = vld [vmem:[#allocation2 + $0x40] sm:$0xff]
    %v72 = vld [vmem:[#allocation2 + $0x48] sm:$0xff]
    %v73 = vld [vmem:[#allocation2 + $0x50] sm:$0xff]
    %v74 = vld [vmem:[#allocation2 + $0x58] sm:$0xff]
    %v75 = vld [vmem:[#allocation2 + $0x60] sm:$0xff]
    %v76 = vld [vmem:[#allocation2 + $0x68] sm:$0xff]
    %v77 = vld [vmem:[#allocation2 + $0x70] sm:$0xff]
    %v78 = vld [vmem:[#allocation2 + $0x78] sm:$0xff]
    %v79 = vld [vmem:[#allocation2 + $0x80] sm:$0xff]
    %v80 = vld [vmem:[#allocation2 + $0x88] sm:$0xff]
    %v81 = vld [vmem:[#allocation2 + $0x90] sm:$0xff]
    %v82 = vld [vmem:[#allocation2 + $0x98] sm:$0xff]
    %v83 = vld [vmem:[#allocation2 + $0xa0] sm:$0xff]
    %v84 = vld [vmem:[#allocation2 + $0xa8] sm:$0xff]
    %v85 = vld [vmem:[#allocation2 + $0xb0] sm:$0xff]
    %v86 = vld [vmem:[#allocation2 + $0xb8] sm:$0xff]
    %v87 = vld [vmem:[#allocation2 + $0xc0] sm:$0xff]
    %v88 = vld [vmem:[#allocation2 + $0xc8] sm:$0xff]
    %v89 = vld [vmem:[#allocation2 + $0xd0] sm:$0xff]
    %v90 = vld [vmem:[#allocation2 + $0xd8] sm:$0xff]
    %v91 = vld [vmem:[#allocation2 + $0xe0] sm:$0xff]
    %v92 = vld [vmem:[#allocation2 + $0xe8] sm:$0xff]
    %v93 = vld [vmem:[#allocation2 + $0xf0] sm:$0xff]
    %v94 = vld [vmem:[#allocation2 + $0xf8] sm:$0xff]
    %v95 = vld [vmem:[#allocation2 + $0x100] sm:$0xff]
    %v96 = vld [vmem:[#allocation2 + $0x108] sm:$0xff]
    %v97 = vld [vmem:[#allocation2 + $0x110] sm:$0xff]
    %v98 = vld [vmem:[#allocation2 + $0x118] sm:$0xff]
    %v99 = vld [vmem:[#allocation2 + $0x120] sm:$0xff]
    %v100 = vld [vmem:[#allocation2 + $0x128] sm:$0xff]
    %v101 = vld [vmem:[#allocation2 + $0x130] sm:$0xff]
    %v102 = vld [vmem:[#allocation2 + $0x138] sm:$0xff]
    %v103 = vld [vmem:[#allocation2 + $0x140] sm:$0xff]
    %v104 = vld [vmem:[#allocation2 + $0x148] sm:$0xff]
    %v105 = vld [vmem:[#allocation2 + $0x150] sm:$0xff]
    %v106 = vld [vmem:[#allocation2 + $0x158] sm:$0xff]
    %v107 = vld [vmem:[#allocation2 + $0x160] sm:$0xff]
    %v108 = vld [vmem:[#allocation2 + $0x168] sm:$0xff]
    %v109 = vld [vmem:[#allocation2 + $0x170] sm:$0xff]
    %v110 = vld [vmem:[#allocation2 + $0x178] sm:$0xff]
    %v111 = vld [vmem:[#allocation2 + $0x180] sm:$0xff]
    %v112 = vld [vmem:[#allocation2 + $0x188] sm:$0xff]
    %v113 = vld [vmem:[#allocation2 + $0x190] sm:$0xff]
    %v114 = vld [vmem:[#allocation2 + $0x198] sm:$0xff]
    %v115 = vld [vmem:[#allocation2 + $0x1a0] sm:$0xff]
    %v116 = vld [vmem:[#allocation2 + $0x1a8] sm:$0xff]
    %v117 = vld [vmem:[#allocation2 + $0x1b0] sm:$0xff]
    %v118 = vld [vmem:[#allocation2 + $0x1b8] sm:$0xff]
    %v119 = vpack.c.bf16 %v70, %v63
    %v120 = vpack.c.bf16 %v71, %v64
    %v121 = vpack.c.bf16 %v72, %v65
    %v122 = vpack.c.bf16 %v73, %v66
    %v123 = vpack.c.bf16 %v74, %v67
    %v124 = vpack.c.bf16 %v75, %v68
    %v125 = vpack.c.bf16 %v76, %v69
    %v126 = vpack.c.bf16 %v84, %v77
    %v127 = vpack.c.bf16 %v85, %v78
    %v128 = vpack.c.bf16 %v86, %v79
    %v129 = vpack.c.bf16 %v87, %v80
    %v130 = vpack.c.bf16 %v88, %v81
    %v131 = vpack.c.bf16 %v89, %v82
    %v132 = vpack.c.bf16 %v90, %v83
    %v133 = vpack.c.bf16 %v98, %v91
    %v134 = vpack.c.bf16 %v99, %v92
    %v135 = vpack.c.bf16 %v100, %v93
    %v136 = vpack.c.bf16 %v101, %v94
    %v137 = vpack.c.bf16 %v102, %v95
    %v138 = vpack.c.bf16 %v103, %v96
    %v139 = vpack.c.bf16 %v104, %v97
    %v140 = vpack.c.bf16 %v112, %v105
    %v141 = vpack.c.bf16 %v113, %v106
    %v142 = vpack.c.bf16 %v114, %v107
    %v143 = vpack.c.bf16 %v115, %v108
    %v144 = vpack.c.bf16 %v116, %v109
    %v145 = vpack.c.bf16 %v117, %v110
    %v146 = vpack.c.bf16 %v118, %v111
    %v147 = vld [vmem:[#allocation5] sm:$0xff]
    %v148 = vld [vmem:[#allocation5 + $0x8] sm:$0xff]
    %v149 = vld [vmem:[#allocation5 + $0x10] sm:$0xff]
    %v150 = vld [vmem:[#allocation5 + $0x18] sm:$0xff]
    %v151 = vld [vmem:[#allocation5 + $0x20] sm:$0xff]
    %v152 = vld [vmem:[#allocation5 + $0x28] sm:$0xff]
    %v153 = vld [vmem:[#allocation5 + $0x30] sm:$0xff]
    %v154 = vld [vmem:[#allocation5 + $0x38] sm:$0xff]
    %v155 = vld [vmem:[#allocation5 + $0x40] sm:$0xff]
    %v156 = vld [vmem:[#allocation5 + $0x48] sm:$0xff]
    %v157 = vld [vmem:[#allocation5 + $0x50] sm:$0xff]
    %v158 = vld [vmem:[#allocation5 + $0x58] sm:$0xff]
    %v159 = vld [vmem:[#allocation5 + $0x60] sm:$0xff]
    %v160 = vld [vmem:[#allocation5 + $0x68] sm:$0xff]
    %v161 = vld [vmem:[#allocation5 + $0x70] sm:$0xff]
    %v162 = vld [vmem:[#allocation5 + $0x78] sm:$0xff]
    %v163 = vld [vmem:[#allocation5 + $0x80] sm:$0xff]
    %v164 = vld [vmem:[#allocation5 + $0x88] sm:$0xff]
    %v165 = vld [vmem:[#allocation5 + $0x90] sm:$0xff]
    %v166 = vld [vmem:[#allocation5 + $0x98] sm:$0xff]
    %v167 = vld [vmem:[#allocation5 + $0xa0] sm:$0xff]
    %v168 = vld [vmem:[#allocation5 + $0xa8] sm:$0xff]
    %v169 = vld [vmem:[#allocation5 + $0xb0] sm:$0xff]
    %v170 = vld [vmem:[#allocation5 + $0xb8] sm:$0xff]
    %v171 = vld [vmem:[#allocation5 + $0xc0] sm:$0xff]
    %v172 = vld [vmem:[#allocation5 + $0xc8] sm:$0xff]
    %v173 = vld [vmem:[#allocation5 + $0xd0] sm:$0xff]
    %v174 = vld [vmem:[#allocation5 + $0xd8] sm:$0xff]
    %v175 = vld [vmem:[#allocation5 + $0xe0] sm:$0xff]
    %v176 = vld [vmem:[#allocation5 + $0xe8] sm:$0xff]
    %v177 = vld [vmem:[#allocation5 + $0xf0] sm:$0xff]
    %v178 = vld [vmem:[#allocation5 + $0xf8] sm:$0xff]
    %v179 = vld [vmem:[#allocation5 + $0x100] sm:$0xff]
    %v180 = vld [vmem:[#allocation5 + $0x108] sm:$0xff]
    %v181 = vld [vmem:[#allocation5 + $0x110] sm:$0xff]
    %v182 = vld [vmem:[#allocation5 + $0x118] sm:$0xff]
    %v183 = vld [vmem:[#allocation5 + $0x120] sm:$0xff]
    %v184 = vld [vmem:[#allocation5 + $0x128] sm:$0xff]
    %v185 = vld [vmem:[#allocation5 + $0x130] sm:$0xff]
    %v186 = vld [vmem:[#allocation5 + $0x138] sm:$0xff]
    %v187 = vld [vmem:[#allocation5 + $0x140] sm:$0xff]
    %v188 = vld [vmem:[#allocation5 + $0x148] sm:$0xff]
    %v189 = vld [vmem:[#allocation5 + $0x150] sm:$0xff]
    %v190 = vld [vmem:[#allocation5 + $0x158] sm:$0xff]
    %v191 = vld [vmem:[#allocation5 + $0x160] sm:$0xff]
    %v192 = vld [vmem:[#allocation5 + $0x168] sm:$0xff]
    %v193 = vld [vmem:[#allocation5 + $0x170] sm:$0xff]
    %v194 = vld [vmem:[#allocation5 + $0x178] sm:$0xff]
    %v195 = vld [vmem:[#allocation5 + $0x180] sm:$0xff]
    %v196 = vld [vmem:[#allocation5 + $0x188] sm:$0xff]
    %v197 = vld [vmem:[#allocation5 + $0x190] sm:$0xff]
    %v198 = vld [vmem:[#allocation5 + $0x198] sm:$0xff]
    %v199 = vld [vmem:[#allocation5 + $0x1a0] sm:$0xff]
    %v200 = vld [vmem:[#allocation5 + $0x1a8] sm:$0xff]
    %v201 = vld [vmem:[#allocation5 + $0x1b0] sm:$0xff]
    %v202 = vld [vmem:[#allocation5 + $0x1b8] sm:$0xff]
    %v203 = vld [vmem:[#allocation5 + $0x1c0] sm:$0xff]
    %v204 = vld [vmem:[#allocation5 + $0x1c8] sm:$0xff]
    %v205 = vld [vmem:[#allocation5 + $0x1d0] sm:$0xff]
    %v206 = vld [vmem:[#allocation5 + $0x1d8] sm:$0xff]
    %v207 = vld [vmem:[#allocation5 + $0x1e0] sm:$0xff]
    %v208 = vld [vmem:[#allocation5 + $0x1e8] sm:$0xff]
    %v209 = vld [vmem:[#allocation5 + $0x1f0] sm:$0xff]
    %v210 = vld [vmem:[#allocation5 + $0x1f8] sm:$0xff]
    %v211 = vld [vmem:[#allocation5 + $0x200] sm:$0xff]
    %v212 = vld [vmem:[#allocation5 + $0x208] sm:$0xff]
    %v213 = vld [vmem:[#allocation5 + $0x210] sm:$0xff]
    %v214 = vld [vmem:[#allocation5 + $0x218] sm:$0xff]
    %v215 = vld [vmem:[#allocation5 + $0x220] sm:$0xff]
    %v216 = vld [vmem:[#allocation5 + $0x228] sm:$0xff]
    %v217 = vld [vmem:[#allocation5 + $0x230] sm:$0xff]
    %v218 = vld [vmem:[#allocation5 + $0x238] sm:$0xff]
    %v219 = vld [vmem:[#allocation5 + $0x240] sm:$0xff]
    %v220 = vld [vmem:[#allocation5 + $0x248] sm:$0xff]
    %v221 = vld [vmem:[#allocation5 + $0x250] sm:$0xff]
    %v222 = vld [vmem:[#allocation5 + $0x258] sm:$0xff]
    %v223 = vld [vmem:[#allocation5 + $0x260] sm:$0xff]
    %v224 = vld [vmem:[#allocation5 + $0x268] sm:$0xff]
    %v225 = vld [vmem:[#allocation5 + $0x270] sm:$0xff]
    %v226 = vld [vmem:[#allocation5 + $0x278] sm:$0xff]
    %v227 = vld [vmem:[#allocation5 + $0x280] sm:$0xff]
    %v228 = vld [vmem:[#allocation5 + $0x288] sm:$0xff]
    %v229 = vld [vmem:[#allocation5 + $0x290] sm:$0xff]
    %v230 = vld [vmem:[#allocation5 + $0x298] sm:$0xff]
    %v231 = vld [vmem:[#allocation5 + $0x2a0] sm:$0xff]
    %v232 = vld [vmem:[#allocation5 + $0x2a8] sm:$0xff]
    %v233 = vld [vmem:[#allocation5 + $0x2b0] sm:$0xff]
    %v234 = vld [vmem:[#allocation5 + $0x2b8] sm:$0xff]
    %v235 = vld [vmem:[#allocation5 + $0x2c0] sm:$0xff]
    %v236 = vld [vmem:[#allocation5 + $0x2c8] sm:$0xff]
    %v237 = vld [vmem:[#allocation5 + $0x2d0] sm:$0xff]
    %v238 = vld [vmem:[#allocation5 + $0x2d8] sm:$0xff]
    %v239 = vld [vmem:[#allocation5 + $0x2e0] sm:$0xff]
    %v240 = vld [vmem:[#allocation5 + $0x2e8] sm:$0xff]
    %v241 = vld [vmem:[#allocation5 + $0x2f0] sm:$0xff]
    %v242 = vld [vmem:[#allocation5 + $0x2f8] sm:$0xff]
    %v243 = vld [vmem:[#allocation5 + $0x300] sm:$0xff]
    %v244 = vld [vmem:[#allocation5 + $0x308] sm:$0xff]
    %v245 = vld [vmem:[#allocation5 + $0x310] sm:$0xff]
    %v246 = vld [vmem:[#allocation5 + $0x318] sm:$0xff]
    %v247 = vld [vmem:[#allocation5 + $0x320] sm:$0xff]
    %v248 = vld [vmem:[#allocation5 + $0x328] sm:$0xff]
    %v249 = vld [vmem:[#allocation5 + $0x330] sm:$0xff]
    %v250 = vld [vmem:[#allocation5 + $0x338] sm:$0xff]
    %v251 = vld [vmem:[#allocation5 + $0x340] sm:$0xff]
    %v252 = vld [vmem:[#allocation5 + $0x348] sm:$0xff]
    %v253 = vld [vmem:[#allocation5 + $0x350] sm:$0xff]
    %v254 = vld [vmem:[#allocation5 + $0x358] sm:$0xff]
    %v255 = vld [vmem:[#allocation5 + $0x360] sm:$0xff]
    %v256 = vld [vmem:[#allocation5 + $0x368] sm:$0xff]
    %v257 = vld [vmem:[#allocation5 + $0x370] sm:$0xff]
    %v258 = vld [vmem:[#allocation5 + $0x378] sm:$0xff]
    %v259 = vld [vmem:[#allocation5 + $0x380] sm:$0xff]
    %v260 = vld [vmem:[#allocation5 + $0x388] sm:$0xff]
    %v261 = vld [vmem:[#allocation5 + $0x390] sm:$0xff]
    %v262 = vld [vmem:[#allocation5 + $0x398] sm:$0xff]
    %v263 = vld [vmem:[#allocation5 + $0x3a0] sm:$0xff]
    %v264 = vld [vmem:[#allocation5 + $0x3a8] sm:$0xff]
    %v265 = vld [vmem:[#allocation5 + $0x3b0] sm:$0xff]
    %v266 = vld [vmem:[#allocation5 + $0x3b8] sm:$0xff]
    %v267 = vld [vmem:[#allocation5 + $0x3c0] sm:$0xff]
    %v268 = vld [vmem:[#allocation5 + $0x3c8] sm:$0xff]
    %v269 = vld [vmem:[#allocation5 + $0x3d0] sm:$0xff]
    %v270 = vld [vmem:[#allocation5 + $0x3d8] sm:$0xff]
    %v271 = vld [vmem:[#allocation5 + $0x3e0] sm:$0xff]
    %v272 = vld [vmem:[#allocation5 + $0x3e8] sm:$0xff]
    %v273 = vld [vmem:[#allocation5 + $0x3f0] sm:$0xff]
    %v274 = vld [vmem:[#allocation5 + $0x3f8] sm:$0xff]
    %v275 = vld [vmem:[#allocation5 + $0x400] sm:$0xff]
    %v276 = vld [vmem:[#allocation5 + $0x408] sm:$0xff]
    %v277 = vld [vmem:[#allocation5 + $0x410] sm:$0xff]
    %v278 = vld [vmem:[#allocation5 + $0x418] sm:$0xff]
    %v279 = vld [vmem:[#allocation5 + $0x420] sm:$0xff]
    %v280 = vld [vmem:[#allocation5 + $0x428] sm:$0xff]
    %v281 = vld [vmem:[#allocation5 + $0x430] sm:$0xff]
    %v282 = vld [vmem:[#allocation5 + $0x438] sm:$0xff]
    %v283 = vld [vmem:[#allocation5 + $0x440] sm:$0xff]
    %v284 = vld [vmem:[#allocation5 + $0x448] sm:$0xff]
    %v285 = vld [vmem:[#allocation5 + $0x450] sm:$0xff]
    %v286 = vld [vmem:[#allocation5 + $0x458] sm:$0xff]
    %v287 = vld [vmem:[#allocation5 + $0x460] sm:$0xff]
    %v288 = vld [vmem:[#allocation5 + $0x468] sm:$0xff]
    %v289 = vld [vmem:[#allocation5 + $0x470] sm:$0xff]
    %v290 = vld [vmem:[#allocation5 + $0x478] sm:$0xff]
    %v291 = vld [vmem:[#allocation5 + $0x480] sm:$0xff]
    %v292 = vld [vmem:[#allocation5 + $0x488] sm:$0xff]
    %v293 = vld [vmem:[#allocation5 + $0x490] sm:$0xff]
    %v294 = vld [vmem:[#allocation5 + $0x498] sm:$0xff]
    %v295 = vld [vmem:[#allocation5 + $0x4a0] sm:$0xff]
    %v296 = vld [vmem:[#allocation5 + $0x4a8] sm:$0xff]
    %v297 = vld [vmem:[#allocation5 + $0x4b0] sm:$0xff]
    %v298 = vld [vmem:[#allocation5 + $0x4b8] sm:$0xff]
    %v299 = vld [vmem:[#allocation5 + $0x4c0] sm:$0xff]
    %v300 = vld [vmem:[#allocation5 + $0x4c8] sm:$0xff]
    %v301 = vld [vmem:[#allocation5 + $0x4d0] sm:$0xff]
    %v302 = vld [vmem:[#allocation5 + $0x4d8] sm:$0xff]
    %v303 = vld [vmem:[#allocation5 + $0x4e0] sm:$0xff]
    %v304 = vld [vmem:[#allocation5 + $0x4e8] sm:$0xff]
    %v305 = vld [vmem:[#allocation5 + $0x4f0] sm:$0xff]
    %v306 = vld [vmem:[#allocation5 + $0x4f8] sm:$0xff]
    %v307 = vld [vmem:[#allocation5 + $0x500] sm:$0xff]
    %v308 = vld [vmem:[#allocation5 + $0x508] sm:$0xff]
    %v309 = vld [vmem:[#allocation5 + $0x510] sm:$0xff]
    %v310 = vld [vmem:[#allocation5 + $0x518] sm:$0xff]
    %v311 = vld [vmem:[#allocation5 + $0x520] sm:$0xff]
    %v312 = vld [vmem:[#allocation5 + $0x528] sm:$0xff]
    %v313 = vld [vmem:[#allocation5 + $0x530] sm:$0xff]
    %v314 = vld [vmem:[#allocation5 + $0x538] sm:$0xff]
    %v315 = vld [vmem:[#allocation5 + $0x540] sm:$0xff]
    %v316 = vld [vmem:[#allocation5 + $0x548] sm:$0xff]
    %v317 = vld [vmem:[#allocation5 + $0x550] sm:$0xff]
    %v318 = vld [vmem:[#allocation5 + $0x558] sm:$0xff]
    %v319 = vld [vmem:[#allocation5 + $0x560] sm:$0xff]
    %v320 = vld [vmem:[#allocation5 + $0x568] sm:$0xff]
    %v321 = vld [vmem:[#allocation5 + $0x570] sm:$0xff]
    %v322 = vld [vmem:[#allocation5 + $0x578] sm:$0xff]
    %v323 = vld [vmem:[#allocation5 + $0x580] sm:$0xff]
    %v324 = vld [vmem:[#allocation5 + $0x588] sm:$0xff]
    %v325 = vld [vmem:[#allocation5 + $0x590] sm:$0xff]
    %v326 = vld [vmem:[#allocation5 + $0x598] sm:$0xff]
    %v327 = vld [vmem:[#allocation5 + $0x5a0] sm:$0xff]
    %v328 = vld [vmem:[#allocation5 + $0x5a8] sm:$0xff]
    %v329 = vld [vmem:[#allocation5 + $0x5b0] sm:$0xff]
    %v330 = vld [vmem:[#allocation5 + $0x5b8] sm:$0xff]
    %v331 = vld [vmem:[#allocation5 + $0x5c0] sm:$0xff]
    %v332 = vld [vmem:[#allocation5 + $0x5c8] sm:$0xff]
    %v333 = vld [vmem:[#allocation5 + $0x5d0] sm:$0xff]
    %v334 = vld [vmem:[#allocation5 + $0x5d8] sm:$0xff]
    %v335 = vld [vmem:[#allocation5 + $0x5e0] sm:$0xff]
    %v336 = vld [vmem:[#allocation5 + $0x5e8] sm:$0xff]
    %v337 = vld [vmem:[#allocation5 + $0x5f0] sm:$0xff]
    %v338 = vld [vmem:[#allocation5 + $0x5f8] sm:$0xff]
    %v339 = vld [vmem:[#allocation5 + $0x600] sm:$0xff]
    %v340 = vld [vmem:[#allocation5 + $0x608] sm:$0xff]
    %v341 = vld [vmem:[#allocation5 + $0x610] sm:$0xff]
    %v342 = vld [vmem:[#allocation5 + $0x618] sm:$0xff]
    %v343 = vld [vmem:[%s2] sm:$0xf]
    %v345 = vlaneseq
    %v346 = vshrl.u32 %v345, 7
    %v347 = vsub.s32 0, %v346
    %v348 = vrot.slane %v343, %v347
    %v349 = vlaneseq
    %v350 = vshrl.u32 %v349, 7
    %v351 = vsub.s32 1, %v350
    %v352 = vrot.slane %v343, %v351
    %v353 = vlaneseq
    %v354 = vshrl.u32 %v353, 7
    %v355 = vsub.s32 2, %v354
    %v356 = vrot.slane %v343, %v355
    %v357 = vlaneseq
    %v358 = vshrl.u32 %v357, 7
    %v359 = vsub.s32 3, %v358
    %v360 = vrot.slane %v343, %v359
    %v561 = vunpack.c.l.b16 %v147
    %v562 = vunpack.c.h.b16 %v147
    %v563 = vunpack.c.l.b16 %v148
    %v564 = vunpack.c.h.b16 %v148
    %v565 = vunpack.c.l.b16 %v149
    %v566 = vunpack.c.h.b16 %v149
    %v567 = vunpack.c.l.b16 %v150
    %v568 = vunpack.c.h.b16 %v150
    %v569 = vunpack.c.l.b16 %v151
    %v570 = vunpack.c.h.b16 %v151
    %v571 = vunpack.c.l.b16 %v152
    %v572 = vunpack.c.h.b16 %v152
    %v573 = vunpack.c.l.b16 %v153
    %v574 = vunpack.c.h.b16 %v153
    %v575 = vunpack.c.l.b16 %v154
    %v576 = vunpack.c.h.b16 %v154
    %v577 = vunpack.c.l.b16 %v155
    %v578 = vunpack.c.h.b16 %v155
    %v579 = vunpack.c.l.b16 %v156
    %v580 = vunpack.c.h.b16 %v156
    %v581 = vunpack.c.l.b16 %v157
    %v582 = vunpack.c.h.b16 %v157
    %v583 = vunpack.c.l.b16 %v158
    %v584 = vunpack.c.h.b16 %v158
    %v585 = vunpack.c.l.b16 %v159
    %v586 = vunpack.c.h.b16 %v159
    %v587 = vunpack.c.l.b16 %v160
    %v588 = vunpack.c.h.b16 %v160
    %v589 = vunpack.c.l.b16 %v161
    %v590 = vunpack.c.h.b16 %v161
    %v591 = vunpack.c.l.b16 %v162
    %v592 = vunpack.c.h.b16 %v162
    %v593 = vunpack.c.l.b16 %v163
    %v594 = vunpack.c.h.b16 %v163
    %v595 = vunpack.c.l.b16 %v164
    %v596 = vunpack.c.h.b16 %v164
    %v597 = vunpack.c.l.b16 %v165
    %v598 = vunpack.c.h.b16 %v165
    %v599 = vunpack.c.l.b16 %v166
    %v600 = vunpack.c.h.b16 %v166
    %v601 = vunpack.c.l.b16 %v167
    %v602 = vunpack.c.h.b16 %v167
    %v603 = vunpack.c.l.b16 %v168
    %v604 = vunpack.c.h.b16 %v168
    %v605 = vunpack.c.l.b16 %v169
    %v606 = vunpack.c.h.b16 %v169
    %v607 = vunpack.c.l.b16 %v170
    %v608 = vunpack.c.h.b16 %v170
    %v609 = vunpack.c.l.b16 %v171
    %v610 = vunpack.c.h.b16 %v171
    %v611 = vunpack.c.l.b16 %v172
    %v612 = vunpack.c.h.b16 %v172
    %v613 = vunpack.c.l.b16 %v173
    %v614 = vunpack.c.h.b16 %v173
    %v615 = vunpack.c.l.b16 %v174
    %v616 = vunpack.c.h.b16 %v174
    %v617 = vunpack.c.l.b16 %v175
    %v618 = vunpack.c.h.b16 %v175
    %v619 = vunpack.c.l.b16 %v176
    %v620 = vunpack.c.h.b16 %v176
    %v621 = vunpack.c.l.b16 %v177
    %v622 = vunpack.c.h.b16 %v177
    %v623 = vunpack.c.l.b16 %v178
    %v624 = vunpack.c.h.b16 %v178
    %v625 = vunpack.c.l.b16 %v179
    %v626 = vunpack.c.h.b16 %v179
    %v627 = vunpack.c.l.b16 %v180
    %v628 = vunpack.c.h.b16 %v180
    %v629 = vunpack.c.l.b16 %v181
    %v630 = vunpack.c.h.b16 %v181
    %v631 = vunpack.c.l.b16 %v182
    %v632 = vunpack.c.h.b16 %v182
    %v633 = vunpack.c.l.b16 %v183
    %v634 = vunpack.c.h.b16 %v183
    %v635 = vunpack.c.l.b16 %v184
    %v636 = vunpack.c.h.b16 %v184
    %v637 = vunpack.c.l.b16 %v185
    %v638 = vunpack.c.h.b16 %v185
    %v639 = vunpack.c.l.b16 %v186
    %v640 = vunpack.c.h.b16 %v186
    %v641 = vunpack.c.l.b16 %v187
    %v642 = vunpack.c.h.b16 %v187
    %v643 = vunpack.c.l.b16 %v188
    %v644 = vunpack.c.h.b16 %v188
    %v645 = vunpack.c.l.b16 %v189
    %v646 = vunpack.c.h.b16 %v189
    %v647 = vunpack.c.l.b16 %v190
    %v648 = vunpack.c.h.b16 %v190
    %v649 = vunpack.c.l.b16 %v191
    %v650 = vunpack.c.h.b16 %v191
    %v651 = vunpack.c.l.b16 %v192
    %v652 = vunpack.c.h.b16 %v192
    %v653 = vunpack.c.l.b16 %v193
    %v654 = vunpack.c.h.b16 %v193
    %v655 = vunpack.c.l.b16 %v194
    %v656 = vunpack.c.h.b16 %v194
    %v657 = vunpack.c.l.b16 %v195
    %v658 = vunpack.c.h.b16 %v195
    %v659 = vunpack.c.l.b16 %v196
    %v660 = vunpack.c.h.b16 %v196
    %v661 = vunpack.c.l.b16 %v197
    %v662 = vunpack.c.h.b16 %v197
    %v663 = vunpack.c.l.b16 %v198
    %v664 = vunpack.c.h.b16 %v198
    %v665 = vunpack.c.l.b16 %v199
    %v666 = vunpack.c.h.b16 %v199
    %v667 = vunpack.c.l.b16 %v200
    %v668 = vunpack.c.h.b16 %v200
    %v669 = vunpack.c.l.b16 %v201
    %v670 = vunpack.c.h.b16 %v201
    %v671 = vunpack.c.l.b16 %v202
    %v672 = vunpack.c.h.b16 %v202
    %v673 = vunpack.c.l.b16 %v203
    %v674 = vunpack.c.h.b16 %v203
    %v675 = vunpack.c.l.b16 %v204
    %v676 = vunpack.c.h.b16 %v204
    %v677 = vunpack.c.l.b16 %v205
    %v678 = vunpack.c.h.b16 %v205
    %v679 = vunpack.c.l.b16 %v206
    %v680 = vunpack.c.h.b16 %v206
    %v681 = vunpack.c.l.b16 %v207
    %v682 = vunpack.c.h.b16 %v207
    %v683 = vunpack.c.l.b16 %v208
    %v684 = vunpack.c.h.b16 %v208
    %v685 = vunpack.c.l.b16 %v209
    %v686 = vunpack.c.h.b16 %v209
    %v687 = vunpack.c.l.b16 %v210
    %v688 = vunpack.c.h.b16 %v210
    %v689 = vunpack.c.l.b16 %v211
    %v690 = vunpack.c.h.b16 %v211
    %v691 = vunpack.c.l.b16 %v212
    %v692 = vunpack.c.h.b16 %v212
    %v693 = vunpack.c.l.b16 %v213
    %v694 = vunpack.c.h.b16 %v213
    %v695 = vunpack.c.l.b16 %v214
    %v696 = vunpack.c.h.b16 %v214
    %v697 = vunpack.c.l.b16 %v215
    %v698 = vunpack.c.h.b16 %v215
    %v699 = vunpack.c.l.b16 %v216
    %v700 = vunpack.c.h.b16 %v216
    %v701 = vunpack.c.l.b16 %v217
    %v702 = vunpack.c.h.b16 %v217
    %v703 = vunpack.c.l.b16 %v218
    %v704 = vunpack.c.h.b16 %v218
    %v705 = vunpack.c.l.b16 %v219
    %v706 = vunpack.c.h.b16 %v219
    %v707 = vunpack.c.l.b16 %v220
    %v708 = vunpack.c.h.b16 %v220
    %v709 = vunpack.c.l.b16 %v221
    %v710 = vunpack.c.h.b16 %v221
    %v711 = vunpack.c.l.b16 %v222
    %v712 = vunpack.c.h.b16 %v222
    %v713 = vunpack.c.l.b16 %v223
    %v714 = vunpack.c.h.b16 %v223
    %v715 = vunpack.c.l.b16 %v224
    %v716 = vunpack.c.h.b16 %v224
    %v717 = vunpack.c.l.b16 %v225
    %v718 = vunpack.c.h.b16 %v225
    %v719 = vunpack.c.l.b16 %v226
    %v720 = vunpack.c.h.b16 %v226
    %v721 = vunpack.c.l.b16 %v227
    %v722 = vunpack.c.h.b16 %v227
    %v723 = vunpack.c.l.b16 %v228
    %v724 = vunpack.c.h.b16 %v228
    %v725 = vunpack.c.l.b16 %v229
    %v726 = vunpack.c.h.b16 %v229
    %v727 = vunpack.c.l.b16 %v230
    %v728 = vunpack.c.h.b16 %v230
    %v729 = vunpack.c.l.b16 %v231
    %v730 = vunpack.c.h.b16 %v231
    %v731 = vunpack.c.l.b16 %v232
    %v732 = vunpack.c.h.b16 %v232
    %v733 = vunpack.c.l.b16 %v233
    %v734 = vunpack.c.h.b16 %v233
    %v735 = vunpack.c.l.b16 %v234
    %v736 = vunpack.c.h.b16 %v234
    %v737 = vunpack.c.l.b16 %v235
    %v738 = vunpack.c.h.b16 %v235
    %v739 = vunpack.c.l.b16 %v236
    %v740 = vunpack.c.h.b16 %v236
    %v741 = vunpack.c.l.b16 %v237
    %v742 = vunpack.c.h.b16 %v237
    %v743 = vunpack.c.l.b16 %v238
    %v744 = vunpack.c.h.b16 %v238
    %v745 = vunpack.c.l.b16 %v239
    %v746 = vunpack.c.h.b16 %v239
    %v747 = vunpack.c.l.b16 %v240
    %v748 = vunpack.c.h.b16 %v240
    %v749 = vunpack.c.l.b16 %v241
    %v750 = vunpack.c.h.b16 %v241
    %v751 = vunpack.c.l.b16 %v242
    %v752 = vunpack.c.h.b16 %v242
    %v753 = vunpack.c.l.b16 %v243
    %v754 = vunpack.c.h.b16 %v243
    %v755 = vunpack.c.l.b16 %v244
    %v756 = vunpack.c.h.b16 %v244
    %v757 = vunpack.c.l.b16 %v245
    %v758 = vunpack.c.h.b16 %v245
    %v759 = vunpack.c.l.b16 %v246
    %v760 = vunpack.c.h.b16 %v246
    %v761 = vunpack.c.l.b16 %v247
    %v762 = vunpack.c.h.b16 %v247
    %v763 = vunpack.c.l.b16 %v248
    %v764 = vunpack.c.h.b16 %v248
    %v765 = vunpack.c.l.b16 %v249
    %v766 = vunpack.c.h.b16 %v249
    %v767 = vunpack.c.l.b16 %v250
    %v768 = vunpack.c.h.b16 %v250
    %v769 = vunpack.c.l.b16 %v251
    %v770 = vunpack.c.h.b16 %v251
    %v771 = vunpack.c.l.b16 %v252
    %v772 = vunpack.c.h.b16 %v252
    %v773 = vunpack.c.l.b16 %v253
    %v774 = vunpack.c.h.b16 %v253
    %v775 = vunpack.c.l.b16 %v254
    %v776 = vunpack.c.h.b16 %v254
    %v777 = vunpack.c.l.b16 %v255
    %v778 = vunpack.c.h.b16 %v255
    %v779 = vunpack.c.l.b16 %v256
    %v780 = vunpack.c.h.b16 %v256
    %v781 = vunpack.c.l.b16 %v257
    %v782 = vunpack.c.h.b16 %v257
    %v783 = vunpack.c.l.b16 %v258
    %v784 = vunpack.c.h.b16 %v258
    %v785 = vunpack.c.l.b16 %v259
    %v786 = vunpack.c.h.b16 %v259
    %v787 = vunpack.c.l.b16 %v260
    %v788 = vunpack.c.h.b16 %v260
    %v789 = vunpack.c.l.b16 %v261
    %v790 = vunpack.c.h.b16 %v261
    %v791 = vunpack.c.l.b16 %v262
    %v792 = vunpack.c.h.b16 %v262
    %v793 = vunpack.c.l.b16 %v263
    %v794 = vunpack.c.h.b16 %v263
    %v795 = vunpack.c.l.b16 %v264
    %v796 = vunpack.c.h.b16 %v264
    %v797 = vunpack.c.l.b16 %v265
    %v798 = vunpack.c.h.b16 %v265
    %v799 = vunpack.c.l.b16 %v266
    %v800 = vunpack.c.h.b16 %v266
    %v801 = vunpack.c.l.b16 %v267
    %v802 = vunpack.c.h.b16 %v267
    %v803 = vunpack.c.l.b16 %v268
    %v804 = vunpack.c.h.b16 %v268
    %v805 = vunpack.c.l.b16 %v269
    %v806 = vunpack.c.h.b16 %v269
    %v807 = vunpack.c.l.b16 %v270
    %v808 = vunpack.c.h.b16 %v270
    %v809 = vunpack.c.l.b16 %v271
    %v810 = vunpack.c.h.b16 %v271
    %v811 = vunpack.c.l.b16 %v272
    %v812 = vunpack.c.h.b16 %v272
    %v813 = vunpack.c.l.b16 %v273
    %v814 = vunpack.c.h.b16 %v273
    %v815 = vunpack.c.l.b16 %v274
    %v816 = vunpack.c.h.b16 %v274
    %v817 = vunpack.c.l.b16 %v275
    %v818 = vunpack.c.h.b16 %v275
    %v819 = vunpack.c.l.b16 %v276
    %v820 = vunpack.c.h.b16 %v276
    %v821 = vunpack.c.l.b16 %v277
    %v822 = vunpack.c.h.b16 %v277
    %v823 = vunpack.c.l.b16 %v278
    %v824 = vunpack.c.h.b16 %v278
    %v825 = vunpack.c.l.b16 %v279
    %v826 = vunpack.c.h.b16 %v279
    %v827 = vunpack.c.l.b16 %v280
    %v828 = vunpack.c.h.b16 %v280
    %v829 = vunpack.c.l.b16 %v281
    %v830 = vunpack.c.h.b16 %v281
    %v831 = vunpack.c.l.b16 %v282
    %v832 = vunpack.c.h.b16 %v282
    %v833 = vunpack.c.l.b16 %v283
    %v834 = vunpack.c.h.b16 %v283
    %v835 = vunpack.c.l.b16 %v284
    %v836 = vunpack.c.h.b16 %v284
    %v837 = vunpack.c.l.b16 %v285
    %v838 = vunpack.c.h.b16 %v285
    %v839 = vunpack.c.l.b16 %v286
    %v840 = vunpack.c.h.b16 %v286
    %v841 = vunpack.c.l.b16 %v287
    %v842 = vunpack.c.h.b16 %v287
    %v843 = vunpack.c.l.b16 %v288
    %v844 = vunpack.c.h.b16 %v288
    %v845 = vunpack.c.l.b16 %v289
    %v846 = vunpack.c.h.b16 %v289
    %v847 = vunpack.c.l.b16 %v290
    %v848 = vunpack.c.h.b16 %v290
    %v849 = vunpack.c.l.b16 %v291
    %v850 = vunpack.c.h.b16 %v291
    %v851 = vunpack.c.l.b16 %v292
    %v852 = vunpack.c.h.b16 %v292
    %v853 = vunpack.c.l.b16 %v293
    %v854 = vunpack.c.h.b16 %v293
    %v855 = vunpack.c.l.b16 %v294
    %v856 = vunpack.c.h.b16 %v294
    %v857 = vunpack.c.l.b16 %v295
    %v858 = vunpack.c.h.b16 %v295
    %v859 = vunpack.c.l.b16 %v296
    %v860 = vunpack.c.h.b16 %v296
    %v861 = vunpack.c.l.b16 %v297
    %v862 = vunpack.c.h.b16 %v297
    %v863 = vunpack.c.l.b16 %v298
    %v864 = vunpack.c.h.b16 %v298
    %v865 = vunpack.c.l.b16 %v299
    %v866 = vunpack.c.h.b16 %v299
    %v867 = vunpack.c.l.b16 %v300
    %v868 = vunpack.c.h.b16 %v300
    %v869 = vunpack.c.l.b16 %v301
    %v870 = vunpack.c.h.b16 %v301
    %v871 = vunpack.c.l.b16 %v302
    %v872 = vunpack.c.h.b16 %v302
    %v873 = vunpack.c.l.b16 %v303
    %v874 = vunpack.c.h.b16 %v303
    %v875 = vunpack.c.l.b16 %v304
    %v876 = vunpack.c.h.b16 %v304
    %v877 = vunpack.c.l.b16 %v305
    %v878 = vunpack.c.h.b16 %v305
    %v879 = vunpack.c.l.b16 %v306
    %v880 = vunpack.c.h.b16 %v306
    %v881 = vunpack.c.l.b16 %v307
    %v882 = vunpack.c.h.b16 %v307
    %v883 = vunpack.c.l.b16 %v308
    %v884 = vunpack.c.h.b16 %v308
    %v885 = vunpack.c.l.b16 %v309
    %v886 = vunpack.c.h.b16 %v309
    %v887 = vunpack.c.l.b16 %v310
    %v888 = vunpack.c.h.b16 %v310
    %v889 = vunpack.c.l.b16 %v311
    %v890 = vunpack.c.h.b16 %v311
    %v891 = vunpack.c.l.b16 %v312
    %v892 = vunpack.c.h.b16 %v312
    %v893 = vunpack.c.l.b16 %v313
    %v894 = vunpack.c.h.b16 %v313
    %v895 = vunpack.c.l.b16 %v314
    %v896 = vunpack.c.h.b16 %v314
    %v897 = vunpack.c.l.b16 %v315
    %v898 = vunpack.c.h.b16 %v315
    %v899 = vunpack.c.l.b16 %v316
    %v900 = vunpack.c.h.b16 %v316
    %v901 = vunpack.c.l.b16 %v317
    %v902 = vunpack.c.h.b16 %v317
    %v903 = vunpack.c.l.b16 %v318
    %v904 = vunpack.c.h.b16 %v318
    %v905 = vunpack.c.l.b16 %v319
    %v906 = vunpack.c.h.b16 %v319
    %v907 = vunpack.c.l.b16 %v320
    %v908 = vunpack.c.h.b16 %v320
    %v909 = vunpack.c.l.b16 %v321
    %v910 = vunpack.c.h.b16 %v321
    %v911 = vunpack.c.l.b16 %v322
    %v912 = vunpack.c.h.b16 %v322
    %v913 = vunpack.c.l.b16 %v323
    %v914 = vunpack.c.h.b16 %v323
    %v915 = vunpack.c.l.b16 %v324
    %v916 = vunpack.c.h.b16 %v324
    %v917 = vunpack.c.l.b16 %v325
    %v918 = vunpack.c.h.b16 %v325
    %v919 = vunpack.c.l.b16 %v326
    %v920 = vunpack.c.h.b16 %v326
    %v921 = vunpack.c.l.b16 %v327
    %v922 = vunpack.c.h.b16 %v327
    %v923 = vunpack.c.l.b16 %v328
    %v924 = vunpack.c.h.b16 %v328
    %v925 = vunpack.c.l.b16 %v329
    %v926 = vunpack.c.h.b16 %v329
    %v927 = vunpack.c.l.b16 %v330
    %v928 = vunpack.c.h.b16 %v330
    %v929 = vunpack.c.l.b16 %v331
    %v930 = vunpack.c.h.b16 %v331
    %v931 = vunpack.c.l.b16 %v332
    %v932 = vunpack.c.h.b16 %v332
    %v933 = vunpack.c.l.b16 %v333
    %v934 = vunpack.c.h.b16 %v333
    %v935 = vunpack.c.l.b16 %v334
    %v936 = vunpack.c.h.b16 %v334
    %v937 = vunpack.c.l.b16 %v335
    %v938 = vunpack.c.h.b16 %v335
    %v939 = vunpack.c.l.b16 %v336
    %v940 = vunpack.c.h.b16 %v336
    %v941 = vunpack.c.l.b16 %v337
    %v942 = vunpack.c.h.b16 %v337
    %v943 = vunpack.c.l.b16 %v338
    %v944 = vunpack.c.h.b16 %v338
    %v945 = vunpack.c.l.b16 %v339
    %v946 = vunpack.c.h.b16 %v339
    %v947 = vunpack.c.l.b16 %v340
    %v948 = vunpack.c.h.b16 %v340
    %v949 = vunpack.c.l.b16 %v341
    %v950 = vunpack.c.h.b16 %v341
    %v951 = vunpack.c.l.b16 %v342
    %v952 = vunpack.c.h.b16 %v342
    %v953 = vpack.c.b16 %v565, %v561
    %v954 = vpack.c.b16 %v566, %v562
    %v955 = vpack.c.b16 %v567, %v563
    %v956 = vpack.c.b16 %v568, %v564
    %v957 = vpack.c.b16 %v573, %v569
    %v958 = vpack.c.b16 %v574, %v570
    %v959 = vpack.c.b16 %v575, %v571
    %v960 = vpack.c.b16 %v576, %v572
    %v961 = vpack.c.b16 %v581, %v577
    %v962 = vpack.c.b16 %v582, %v578
    %v963 = vpack.c.b16 %v583, %v579
    %v964 = vpack.c.b16 %v584, %v580
    %v965 = vpack.c.b16 %v589, %v585
    %v966 = vpack.c.b16 %v590, %v586
    %v967 = vpack.c.b16 %v591, %v587
    %v968 = vpack.c.b16 %v592, %v588
    %v969 = vpack.c.b16 %v597, %v593
    %v970 = vpack.c.b16 %v598, %v594
    %v971 = vpack.c.b16 %v599, %v595
    %v972 = vpack.c.b16 %v600, %v596
    %v973 = vpack.c.b16 %v605, %v601
    %v974 = vpack.c.b16 %v606, %v602
    %v975 = vpack.c.b16 %v607, %v603
    %v976 = vpack.c.b16 %v608, %v604
    %v977 = vpack.c.b16 %v613, %v609
    %v978 = vpack.c.b16 %v614, %v610
    %v979 = vpack.c.b16 %v615, %v611
    %v980 = vpack.c.b16 %v616, %v612
    %v981 = vpack.c.b16 %v621, %v617
    %v982 = vpack.c.b16 %v622, %v618
    %v983 = vpack.c.b16 %v623, %v619
    %v984 = vpack.c.b16 %v624, %v620
    %v985 = vpack.c.b16 %v629, %v625
    %v986 = vpack.c.b16 %v630, %v626
    %v987 = vpack.c.b16 %v631, %v627
    %v988 = vpack.c.b16 %v632, %v628
    %v989 = vpack.c.b16 %v637, %v633
    %v990 = vpack.c.b16 %v638, %v634
    %v991 = vpack.c.b16 %v639, %v635
    %v992 = vpack.c.b16 %v640, %v636
    %v993 = vpack.c.b16 %v645, %v641
    %v994 = vpack.c.b16 %v646, %v642
    %v995 = vpack.c.b16 %v647, %v643
    %v996 = vpack.c.b16 %v648, %v644
    %v997 = vpack.c.b16 %v653, %v649
    %v998 = vpack.c.b16 %v654, %v650
    %v999 = vpack.c.b16 %v655, %v651
    %v1000 = vpack.c.b16 %v656, %v652
    %v1001 = vpack.c.b16 %v661, %v657
    %v1002 = vpack.c.b16 %v662, %v658
    %v1003 = vpack.c.b16 %v663, %v659
    %v1004 = vpack.c.b16 %v664, %v660
    %v1005 = vpack.c.b16 %v669, %v665
    %v1006 = vpack.c.b16 %v670, %v666
    %v1007 = vpack.c.b16 %v671, %v667
    %v1008 = vpack.c.b16 %v672, %v668
    %v1009 = vpack.c.b16 %v677, %v673
    %v1010 = vpack.c.b16 %v678, %v674
    %v1011 = vpack.c.b16 %v679, %v675
    %v1012 = vpack.c.b16 %v680, %v676
    %v1013 = vpack.c.b16 %v685, %v681
    %v1014 = vpack.c.b16 %v686, %v682
    %v1015 = vpack.c.b16 %v687, %v683
    %v1016 = vpack.c.b16 %v688, %v684
    %v1017 = vpack.c.b16 %v693, %v689
    %v1018 = vpack.c.b16 %v694, %v690
    %v1019 = vpack.c.b16 %v695, %v691
    %v1020 = vpack.c.b16 %v696, %v692
    %v1021 = vpack.c.b16 %v701, %v697
    %v1022 = vpack.c.b16 %v702, %v698
    %v1023 = vpack.c.b16 %v703, %v699
    %v1024 = vpack.c.b16 %v704, %v700
    %v1025 = vpack.c.b16 %v709, %v705
    %v1026 = vpack.c.b16 %v710, %v706
    %v1027 = vpack.c.b16 %v711, %v707
    %v1028 = vpack.c.b16 %v712, %v708
    %v1029 = vpack.c.b16 %v717, %v713
    %v1030 = vpack.c.b16 %v718, %v714
    %v1031 = vpack.c.b16 %v719, %v715
    %v1032 = vpack.c.b16 %v720, %v716
    %v1033 = vpack.c.b16 %v725, %v721
    %v1034 = vpack.c.b16 %v726, %v722
    %v1035 = vpack.c.b16 %v727, %v723
    %v1036 = vpack.c.b16 %v728, %v724
    %v1037 = vpack.c.b16 %v733, %v729
    %v1038 = vpack.c.b16 %v734, %v730
    %v1039 = vpack.c.b16 %v735, %v731
    %v1040 = vpack.c.b16 %v736, %v732
    %v1041 = vpack.c.b16 %v741, %v737
    %v1042 = vpack.c.b16 %v742, %v738
    %v1043 = vpack.c.b16 %v743, %v739
    %v1044 = vpack.c.b16 %v744, %v740
    %v1045 = vpack.c.b16 %v749, %v745
    %v1046 = vpack.c.b16 %v750, %v746
    %v1047 = vpack.c.b16 %v751, %v747
    %v1048 = vpack.c.b16 %v752, %v748
    %v1049 = vpack.c.b16 %v757, %v753
    %v1050 = vpack.c.b16 %v758, %v754
    %v1051 = vpack.c.b16 %v759, %v755
    %v1052 = vpack.c.b16 %v760, %v756
    %v1053 = vpack.c.b16 %v765, %v761
    %v1054 = vpack.c.b16 %v766, %v762
    %v1055 = vpack.c.b16 %v767, %v763
    %v1056 = vpack.c.b16 %v768, %v764
    %v1057 = vpack.c.b16 %v773, %v769
    %v1058 = vpack.c.b16 %v774, %v770
    %v1059 = vpack.c.b16 %v775, %v771
    %v1060 = vpack.c.b16 %v776, %v772
    %v1061 = vpack.c.b16 %v781, %v777
    %v1062 = vpack.c.b16 %v782, %v778
    %v1063 = vpack.c.b16 %v783, %v779
    %v1064 = vpack.c.b16 %v784, %v780
    %v1065 = vpack.c.b16 %v789, %v785
    %v1066 = vpack.c.b16 %v790, %v786
    %v1067 = vpack.c.b16 %v791, %v787
    %v1068 = vpack.c.b16 %v792, %v788
    %v1069 = vpack.c.b16 %v797, %v793
    %v1070 = vpack.c.b16 %v798, %v794
    %v1071 = vpack.c.b16 %v799, %v795
    %v1072 = vpack.c.b16 %v800, %v796
    %v1073 = vpack.c.b16 %v805, %v801
    %v1074 = vpack.c.b16 %v806, %v802
    %v1075 = vpack.c.b16 %v807, %v803
    %v1076 = vpack.c.b16 %v808, %v804
    %v1077 = vpack.c.b16 %v813, %v809
    %v1078 = vpack.c.b16 %v814, %v810
    %v1079 = vpack.c.b16 %v815, %v811
    %v1080 = vpack.c.b16 %v816, %v812
    %v1081 = vpack.c.b16 %v821, %v817
    %v1082 = vpack.c.b16 %v822, %v818
    %v1083 = vpack.c.b16 %v823, %v819
    %v1084 = vpack.c.b16 %v824, %v820
    %v1085 = vpack.c.b16 %v829, %v825
    %v1086 = vpack.c.b16 %v830, %v826
    %v1087 = vpack.c.b16 %v831, %v827
    %v1088 = vpack.c.b16 %v832, %v828
    %v1089 = vpack.c.b16 %v837, %v833
    %v1090 = vpack.c.b16 %v838, %v834
    %v1091 = vpack.c.b16 %v839, %v835
    %v1092 = vpack.c.b16 %v840, %v836
    %v1093 = vpack.c.b16 %v845, %v841
    %v1094 = vpack.c.b16 %v846, %v842
    %v1095 = vpack.c.b16 %v847, %v843
    %v1096 = vpack.c.b16 %v848, %v844
    %v1097 = vpack.c.b16 %v853, %v849
    %v1098 = vpack.c.b16 %v854, %v850
    %v1099 = vpack.c.b16 %v855, %v851
    %v1100 = vpack.c.b16 %v856, %v852
    %v1101 = vpack.c.b16 %v861, %v857
    %v1102 = vpack.c.b16 %v862, %v858
    %v1103 = vpack.c.b16 %v863, %v859
    %v1104 = vpack.c.b16 %v864, %v860
    %v1105 = vpack.c.b16 %v869, %v865
    %v1106 = vpack.c.b16 %v870, %v866
    %v1107 = vpack.c.b16 %v871, %v867
    %v1108 = vpack.c.b16 %v872, %v868
    %v1109 = vpack.c.b16 %v877, %v873
    %v1110 = vpack.c.b16 %v878, %v874
    %v1111 = vpack.c.b16 %v879, %v875
    %v1112 = vpack.c.b16 %v880, %v876
    %v1113 = vpack.c.b16 %v885, %v881
    %v1114 = vpack.c.b16 %v886, %v882
    %v1115 = vpack.c.b16 %v887, %v883
    %v1116 = vpack.c.b16 %v888, %v884
    %v1117 = vpack.c.b16 %v893, %v889
    %v1118 = vpack.c.b16 %v894, %v890
    %v1119 = vpack.c.b16 %v895, %v891
    %v1120 = vpack.c.b16 %v896, %v892
    %v1121 = vpack.c.b16 %v901, %v897
    %v1122 = vpack.c.b16 %v902, %v898
    %v1123 = vpack.c.b16 %v903, %v899
    %v1124 = vpack.c.b16 %v904, %v900
    %v1125 = vpack.c.b16 %v909, %v905
    %v1126 = vpack.c.b16 %v910, %v906
    %v1127 = vpack.c.b16 %v911, %v907
    %v1128 = vpack.c.b16 %v912, %v908
    %v1129 = vpack.c.b16 %v917, %v913
    %v1130 = vpack.c.b16 %v918, %v914
    %v1131 = vpack.c.b16 %v919, %v915
    %v1132 = vpack.c.b16 %v920, %v916
    %v1133 = vpack.c.b16 %v925, %v921
    %v1134 = vpack.c.b16 %v926, %v922
    %v1135 = vpack.c.b16 %v927, %v923
    %v1136 = vpack.c.b16 %v928, %v924
    %v1137 = vpack.c.b16 %v933, %v929
    %v1138 = vpack.c.b16 %v934, %v930
    %v1139 = vpack.c.b16 %v935, %v931
    %v1140 = vpack.c.b16 %v936, %v932
    %v1141 = vpack.c.b16 %v941, %v937
    %v1142 = vpack.c.b16 %v942, %v938
    %v1143 = vpack.c.b16 %v943, %v939
    %v1144 = vpack.c.b16 %v944, %v940
    %v1145 = vpack.c.b16 %v949, %v945
    %v1146 = vpack.c.b16 %v950, %v946
    %v1147 = vpack.c.b16 %v951, %v947
    %v1148 = vpack.c.b16 %v952, %v948
    %vm1345 = vcmask 130048
    %v1347 = vsel %vm1345, %v125, 0
    %v1350 = vsel %vm1345, %v132, 0
    %v1353 = vsel %vm1345, %v139, 0
    %v1356 = vsel %vm1345, %v146, 0
    %1358 = vmatprep.subr.bf16.mxu0 %v954
    %1359 = vmatpush1.bf16.msra.mxu0 %v953
    %1360 = vmatprep.subr.bf16.mxu0 %v958
    %1361 = vmatpush1.bf16.msra.mxu0 %v957
    %1362 = vmatprep.subr.bf16.mxu0 %v962
    %1363 = vmatpush1.bf16.msra.mxu0 %v961
    %1364 = vmatprep.subr.bf16.mxu0 %v966
    %1365 = vmatpush1.bf16.msra.mxu0 %v965
    %1366 = vmatprep.subr.bf16.mxu0 %v970
    %1367 = vmatpush1.bf16.msra.mxu0 %v969
    %1368 = vmatprep.subr.bf16.mxu0 %v974
    %1369 = vmatpush1.bf16.msra.mxu0 %v973
    %1370 = vmatprep.subr.bf16.mxu0 %v978
    %1371 = vmatpush1.bf16.msra.mxu0 %v977
    %1372 = vmatprep.subr.bf16.mxu0 %v982
    %1373 = vmatpush1.bf16.msra.mxu0 %v981
    %1374 = vmatprep.subr.bf16.mxu0 %v986
    %1375 = vmatpush1.bf16.msra.mxu0 %v985
    %1376 = vmatprep.subr.bf16.mxu0 %v990
    %1377 = vmatpush1.bf16.msra.mxu0 %v989
    %1378 = vmatprep.subr.bf16.mxu0 %v994
    %1379 = vmatpush1.bf16.msra.mxu0 %v993
    %1380 = vmatprep.subr.bf16.mxu0 %v998
    %1381 = vmatpush1.bf16.msra.mxu0 %v997
    %1382 = vmatprep.subr.bf16.mxu0 %v1002
    %1383 = vmatpush1.bf16.msra.mxu0 %v1001
    %1384 = vmatprep.subr.bf16.mxu0 %v1006
    %1385 = vmatpush1.bf16.msra.mxu0 %v1005
    %1386 = vmatprep.subr.bf16.mxu0 %v1010
    %1387 = vmatpush1.bf16.msra.mxu0 %v1009
    %1388 = vmatprep.subr.bf16.mxu0 %v1014
    %1389 = vmatpush1.bf16.msra.mxu0 %v1013
    %1390 = vmatprep.mubr.bf16.mxu0 %v120
    %1391 = vmatmul.mubr.bf16.gmra.mrb[0].mxu0 %v119
    %v1392 = vpop.f32.mrb[0].mxu0
    %v1393 = vadd.f32 %v348, %v1392
    %v1394 = vpop.f32.mrb[0].mxu0
    %v1395 = vadd.f32 %v352, %v1394
    %v1396 = vpop.f32.mrb[0].mxu0
    %v1397 = vadd.f32 %v348, %v1396
    %v1398 = vpop.f32.mrb[0].mxu0
    %v1399 = vadd.f32 %v352, %v1398
    %1400 = vmatprep.mubr.bf16.mxu0 %v127
    %1401 = vmatmul.mubr.bf16.gmra.mrb[0].mxu0 %v126
    %v1402 = vpop.f32.mrb[0].mxu0
    %v1403 = vadd.f32 %v348, %v1402
    %v1404 = vpop.f32.mrb[0].mxu0
    %v1405 = vadd.f32 %v352, %v1404
    %v1406 = vpop.f32.mrb[0].mxu0
    %v1407 = vadd.f32 %v348, %v1406
    %v1408 = vpop.f32.mrb[0].mxu0
    %v1409 = vadd.f32 %v352, %v1408
    %1410 = vmatprep.mubr.bf16.mxu0 %v134
    %1411 = vmatmul.mubr.bf16.gmra.mrb[0].mxu0 %v133
    %v1412 = vpop.f32.mrb[0].mxu0
    %v1413 = vadd.f32 %v348, %v1412
    %v1414 = vpop.f32.mrb[0].mxu0
    %v1415 = vadd.f32 %v352, %v1414
    %v1416 = vpop.f32.mrb[0].mxu0
    %v1417 = vadd.f32 %v348, %v1416
    %v1418 = vpop.f32.mrb[0].mxu0
    %v1419 = vadd.f32 %v352, %v1418
    %1420 = vmatprep.mubr.bf16.mxu0 %v141
    %1421 = vmatmul.mubr.bf16.gmra.mrb[0].mxu0 %v140
    %v1422 = vpop.f32.mrb[0].mxu0
    %v1423 = vadd.f32 %v348, %v1422
    %v1424 = vpop.f32.mrb[0].mxu0
    %v1425 = vadd.f32 %v352, %v1424
    %v1426 = vpop.f32.mrb[0].mxu0
    %v1427 = vadd.f32 %v348, %v1426
    %v1428 = vpop.f32.mrb[0].mxu0
    %v1429 = vadd.f32 %v352, %v1428
    %1430 = vdwg.mxu0
    %1431 = vmatprep.subr.bf16.mxu0 %v1018
    %1432 = vmatpush1.bf16.msra.mxu0 %v1017
    %1433 = vmatprep.subr.bf16.mxu0 %v1022
    %1434 = vmatpush1.bf16.msra.mxu0 %v1021
    %1435 = vmatprep.subr.bf16.mxu0 %v1026
    %1436 = vmatpush1.bf16.msra.mxu0 %v1025
    %1437 = vmatprep.subr.bf16.mxu0 %v1030
    %1438 = vmatpush1.bf16.msra.mxu0 %v1029
    %1439 = vmatprep.subr.bf16.mxu0 %v1034
    %1440 = vmatpush1.bf16.msra.mxu0 %v1033
    %1441 = vmatprep.subr.bf16.mxu0 %v1038
    %1442 = vmatpush1.bf16.msra.mxu0 %v1037
    %1443 = vmatprep.subr.bf16.mxu0 %v1042
    %1444 = vmatpush1.bf16.msra.mxu0 %v1041
    %1445 = vmatprep.subr.bf16.mxu0 %v1046
    %1446 = vmatpush1.bf16.msra.mxu0 %v1045
    %1447 = vmatprep.subr.bf16.mxu0 %v1050
    %1448 = vmatpush1.bf16.msra.mxu0 %v1049
    %1449 = vmatprep.subr.bf16.mxu0 %v1054
    %1450 = vmatpush1.bf16.msra.mxu0 %v1053
    %1451 = vmatprep.subr.bf16.mxu0 %v1058
    %1452 = vmatpush1.bf16.msra.mxu0 %v1057
    %1453 = vmatprep.subr.bf16.mxu0 %v1062
    %1454 = vmatpush1.bf16.msra.mxu0 %v1061
    %1455 = vmatprep.subr.bf16.mxu0 %v1066
    %1456 = vmatpush1.bf16.msra.mxu0 %v1065
    %1457 = vmatprep.subr.bf16.mxu0 %v1070
    %1458 = vmatpush1.bf16.msra.mxu0 %v1069
    %1459 = vmatprep.subr.bf16.mxu0 %v1074
    %1460 = vmatpush1.bf16.msra.mxu0 %v1073
    %1461 = vmatprep.subr.bf16.mxu0 %v1078
    %1462 = vmatpush1.bf16.msra.mxu0 %v1077
    %1463 = vmatprep.mubr.bf16.mxu0 %v122
    %1464 = vmatmul.mubr.bf16.gmra.mrb[0].mxu0 %v121
    %v1465 = vpop.f32.mrb[0].mxu0
    %v1466 = vadd.f32 %v1393, %v1465
    %v1467 = vpop.f32.mrb[0].mxu0
    %v1468 = vadd.f32 %v1395, %v1467
    %v1469 = vpop.f32.mrb[0].mxu0
    %v1470 = vadd.f32 %v1397, %v1469
    %v1471 = vpop.f32.mrb[0].mxu0
    %v1472 = vadd.f32 %v1399, %v1471
    %1473 = vmatprep.mubr.bf16.mxu0 %v129
    %1474 = vmatmul.mubr.bf16.gmra.mrb[0].mxu0 %v128
    %v1475 = vpop.f32.mrb[0].mxu0
    %v1476 = vadd.f32 %v1403, %v1475
    %v1477 = vpop.f32.mrb[0].mxu0
    %v1478 = vadd.f32 %v1405, %v1477
    %v1479 = vpop.f32.mrb[0].mxu0
    %v1480 = vadd.f32 %v1407, %v1479
    %v1481 = vpop.f32.mrb[0].mxu0
    %v1482 = vadd.f32 %v1409, %v1481
    %1483 = vmatprep.mubr.bf16.mxu0 %v136
    %1484 = vmatmul.mubr.bf16.gmra.mrb[0].mxu0 %v135
    %v1485 = vpop.f32.mrb[0].mxu0
    %v1486 = vadd.f32 %v1413, %v1485
    %v1487 = vpop.f32.mrb[0].mxu0
    %v1488 = vadd.f32 %v1415, %v1487
    %v1489 = vpop.f32.mrb[0].mxu0
    %v1490 = vadd.f32 %v1417, %v1489
    %v1491 = vpop.f32.mrb[0].mxu0
    %v1492 = vadd.f32 %v1419, %v1491
    %1493 = vmatprep.mubr.bf16.mxu0 %v143
    %1494 = vmatmul.mubr.bf16.gmra.mrb[0].mxu0 %v142
    %v1495 = vpop.f32.mrb[0].mxu0
    %v1496 = vadd.f32 %v1423, %v1495
    %v1497 = vpop.f32.mrb[0].mxu0
    %v1498 = vadd.f32 %v1425, %v1497
    %v1499 = vpop.f32.mrb[0].mxu0
    %v1500 = vadd.f32 %v1427, %v1499
    %v1501 = vpop.f32.mrb[0].mxu0
    %v1502 = vadd.f32 %v1429, %v1501
    %1503 = vdwg.mxu0
    %1504 = vmatprep.subr.bf16.mxu0 %v1082
    %1505 = vmatpush1.bf16.msra.mxu0 %v1081
    %1506 = vmatprep.subr.bf16.mxu0 %v1086
    %1507 = vmatpush1.bf16.msra.mxu0 %v1085
    %1508 = vmatprep.subr.bf16.mxu0 %v1090
    %1509 = vmatpush1.bf16.msra.mxu0 %v1089
    %1510 = vmatprep.subr.bf16.mxu0 %v1094
    %1511 = vmatpush1.bf16.msra.mxu0 %v1093
    %1512 = vmatprep.subr.bf16.mxu0 %v1098
    %1513 = vmatpush1.bf16.msra.mxu0 %v1097
    %1514 = vmatprep.subr.bf16.mxu0 %v1102
    %1515 = vmatpush1.bf16.msra.mxu0 %v1101
    %1516 = vmatprep.subr.bf16.mxu0 %v1106
    %1517 = vmatpush1.bf16.msra.mxu0 %v1105
    %1518 = vmatprep.subr.bf16.mxu0 %v1110
    %1519 = vmatpush1.bf16.msra.mxu0 %v1109
    %1520 = vmatprep.subr.bf16.mxu0 %v1114
    %1521 = vmatpush1.bf16.msra.mxu0 %v1113
    %1522 = vmatprep.subr.bf16.mxu0 %v1118
    %1523 = vmatpush1.bf16.msra.mxu0 %v1117
    %1524 = vmatprep.subr.bf16.mxu0 %v1122
    %1525 = vmatpush1.bf16.msra.mxu0 %v1121
    %1526 = vmatprep.subr.bf16.mxu0 %v1126
    %1527 = vmatpush1.bf16.msra.mxu0 %v1125
    %1528 = vmatprep.subr.bf16.mxu0 %v1130
    %1529 = vmatpush1.bf16.msra.mxu0 %v1129
    %1530 = vmatprep.subr.bf16.mxu0 %v1134
    %1531 = vmatpush1.bf16.msra.mxu0 %v1133
    %1532 = vmatprep.subr.bf16.mxu0 %v1138
    %1533 = vmatpush1.bf16.msra.mxu0 %v1137
    %1534 = vmatprep.subr.bf16.mxu0 %v1142
    %1535 = vmatpush1.bf16.msra.mxu0 %v1141
    %1536 = vmatprep.mubr.bf16.mxu0 %v124
    %1537 = vmatmul.mubr.bf16.gmra.mrb[0].mxu0 %v123
    %v1538 = vpop.f32.mrb[0].mxu0
    %v1539 = vadd.f32 %v1466, %v1538
    %v1540 = vpop.f32.mrb[0].mxu0
    %v1541 = vadd.f32 %v1468, %v1540
    %v1542 = vpop.f32.mrb[0].mxu0
    %v1543 = vadd.f32 %v1470, %v1542
    %v1544 = vpop.f32.mrb[0].mxu0
    %v1545 = vadd.f32 %v1472, %v1544
    %1546 = vmatprep.mubr.bf16.mxu0 %v131
    %1547 = vmatmul.mubr.bf16.gmra.mrb[0].mxu0 %v130
    %v1548 = vpop.f32.mrb[0].mxu0
    %v1549 = vadd.f32 %v1476, %v1548
    %v1550 = vpop.f32.mrb[0].mxu0
    %v1551 = vadd.f32 %v1478, %v1550
    %v1552 = vpop.f32.mrb[0].mxu0
    %v1553 = vadd.f32 %v1480, %v1552
    %v1554 = vpop.f32.mrb[0].mxu0
    %v1555 = vadd.f32 %v1482, %v1554
    %1556 = vmatprep.mubr.bf16.mxu0 %v138
    %1557 = vmatmul.mubr.bf16.gmra.mrb[0].mxu0 %v137
    %v1558 = vpop.f32.mrb[0].mxu0
    %v1559 = vadd.f32 %v1486, %v1558
    %v1560 = vpop.f32.mrb[0].mxu0
    %v1561 = vadd.f32 %v1488, %v1560
    %v1562 = vpop.f32.mrb[0].mxu0
    %v1563 = vadd.f32 %v1490, %v1562
    %v1564 = vpop.f32.mrb[0].mxu0
    %v1565 = vadd.f32 %v1492, %v1564
    %1566 = vmatprep.mubr.bf16.mxu0 %v145
    %1567 = vmatmul.mubr.bf16.gmra.mrb[0].mxu0 %v144
    %v1568 = vpop.f32.mrb[0].mxu0
    %v1569 = vadd.f32 %v1496, %v1568
    %v1570 = vpop.f32.mrb[0].mxu0
    %v1571 = vadd.f32 %v1498, %v1570
    %v1572 = vpop.f32.mrb[0].mxu0
    %v1573 = vadd.f32 %v1500, %v1572
    %v1574 = vpop.f32.mrb[0].mxu0
    %v1575 = vadd.f32 %v1502, %v1574
    %1576 = vdwg.mxu0
    %1577 = vmatprep.subr.bf16.mxu0 %v1146
    %1578 = vmatpush1.bf16.msra.mxu0 %v1145
    %1579 = vmatprep.subr.bf16.mxu0 0
    %1580 = vmatpush1.bf16.msra.mxu0 0
    %1581 = vmatprep.subr.bf16.mxu0 0
    %1582 = vmatpush1.bf16.msra.mxu0 0
    %1583 = vmatprep.subr.bf16.mxu0 0
    %1584 = vmatpush1.bf16.msra.mxu0 0
    %1585 = vmatprep.subr.bf16.mxu0 0
    %1586 = vmatpush1.bf16.msra.mxu0 0
    %1587 = vmatprep.subr.bf16.mxu0 0
    %1588 = vmatpush1.bf16.msra.mxu0 0
    %1589 = vmatprep.subr.bf16.mxu0 0
    %1590 = vmatpush1.bf16.msra.mxu0 0
    %1591 = vmatprep.subr.bf16.mxu0 0
    %1592 = vmatpush1.bf16.msra.mxu0 0
    %1593 = vmatprep.subr.bf16.mxu0 0
    %1594 = vmatpush1.bf16.msra.mxu0 0
    %1595 = vmatprep.subr.bf16.mxu0 0
    %1596 = vmatpush1.bf16.msra.mxu0 0
    %1597 = vmatprep.subr.bf16.mxu0 0
    %1598 = vmatpush1.bf16.msra.mxu0 0
    %1599 = vmatprep.subr.bf16.mxu0 0
    %1600 = vmatpush1.bf16.msra.mxu0 0
    %1601 = vmatprep.subr.bf16.mxu0 0
    %1602 = vmatpush1.bf16.msra.mxu0 0
    %1603 = vmatprep.subr.bf16.mxu0 0
    %1604 = vmatpush1.bf16.msra.mxu0 0
    %1605 = vmatprep.subr.bf16.mxu0 0
    %1606 = vmatpush1.bf16.msra.mxu0 0
    %1607 = vmatprep.subr.bf16.mxu0 0
    %1608 = vmatpush1.bf16.msra.mxu0 0
    %1609 = vmatprep.mubr.bf16.mxu0 0
    %1610 = vmatmul.mubr.bf16.gmra.mrb[0].mxu0 %v1347
    %v1611 = vpop.f32.mrb[0].mxu0
    %v1612 = vadd.f32 %v1539, %v1611
    %v1613 = vpop.f32.mrb[0].mxu0
    %v1614 = vadd.f32 %v1541, %v1613
    %v1615 = vpop.f32.mrb[0].mxu0
    %v1616 = vadd.f32 %v1543, %v1615
    %v1617 = vpop.f32.mrb[0].mxu0
    %v1618 = vadd.f32 %v1545, %v1617
    %1619 = vmatprep.mubr.bf16.mxu0 0
    %1620 = vmatmul.mubr.bf16.gmra.mrb[0].mxu0 %v1350
    %v1621 = vpop.f32.mrb[0].mxu0
    %v1622 = vadd.f32 %v1549, %v1621
    %v1623 = vpop.f32.mrb[0].mxu0
    %v1624 = vadd.f32 %v1551, %v1623
    %v1625 = vpop.f32.mrb[0].mxu0
    %v1626 = vadd.f32 %v1553, %v1625
    %v1627 = vpop.f32.mrb[0].mxu0
    %v1628 = vadd.f32 %v1555, %v1627
    %1629 = vmatprep.mubr.bf16.mxu0 0
    %1630 = vmatmul.mubr.bf16.gmra.mrb[0].mxu0 %v1353
    %v1631 = vpop.f32.mrb[0].mxu0
    %v1632 = vadd.f32 %v1559, %v1631
    %v1633 = vpop.f32.mrb[0].mxu0
    %v1634 = vadd.f32 %v1561, %v1633
    %v1635 = vpop.f32.mrb[0].mxu0
    %v1636 = vadd.f32 %v1563, %v1635
    %v1637 = vpop.f32.mrb[0].mxu0
    %v1638 = vadd.f32 %v1565, %v1637
    %1639 = vmatprep.mubr.bf16.mxu0 0
    %1640 = vmatmul.mubr.bf16.gmra.mrb[0].mxu0 %v1356
    %v1641 = vpop.f32.mrb[0].mxu0
    %v1642 = vadd.f32 %v1569, %v1641
    %v1643 = vpop.f32.mrb[0].mxu0
    %v1644 = vadd.f32 %v1571, %v1643
    %v1645 = vpop.f32.mrb[0].mxu0
    %v1646 = vadd.f32 %v1573, %v1645
    %v1647 = vpop.f32.mrb[0].mxu0
    %v1648 = vadd.f32 %v1575, %v1647
    %1649 = vdwg.mxu0
    %1650 = vmatprep.subr.bf16.mxu0 %v956
    %1651 = vmatpush1.bf16.msra.mxu0 %v955
    %1652 = vmatprep.subr.bf16.mxu0 %v960
    %1653 = vmatpush1.bf16.msra.mxu0 %v959
    %1654 = vmatprep.subr.bf16.mxu0 %v964
    %1655 = vmatpush1.bf16.msra.mxu0 %v963
    %1656 = vmatprep.subr.bf16.mxu0 %v968
    %1657 = vmatpush1.bf16.msra.mxu0 %v967
    %1658 = vmatprep.subr.bf16.mxu0 %v972
    %1659 = vmatpush1.bf16.msra.mxu0 %v971
    %1660 = vmatprep.subr.bf16.mxu0 %v976
    %1661 = vmatpush1.bf16.msra.mxu0 %v975
    %1662 = vmatprep.subr.bf16.mxu0 %v980
    %1663 = vmatpush1.bf16.msra.mxu0 %v979
    %1664 = vmatprep.subr.bf16.mxu0 %v984
    %1665 = vmatpush1.bf16.msra.mxu0 %v983
    %1666 = vmatprep.subr.bf16.mxu0 %v988
    %1667 = vmatpush1.bf16.msra.mxu0 %v987
    %1668 = vmatprep.subr.bf16.mxu0 %v992
    %1669 = vmatpush1.bf16.msra.mxu0 %v991
    %1670 = vmatprep.subr.bf16.mxu0 %v996
    %1671 = vmatpush1.bf16.msra.mxu0 %v995
    %1672 = vmatprep.subr.bf16.mxu0 %v1000
    %1673 = vmatpush1.bf16.msra.mxu0 %v999
    %1674 = vmatprep.subr.bf16.mxu0 %v1004
    %1675 = vmatpush1.bf16.msra.mxu0 %v1003
    %1676 = vmatprep.subr.bf16.mxu0 %v1008
    %1677 = vmatpush1.bf16.msra.mxu0 %v1007
    %1678 = vmatprep.subr.bf16.mxu0 %v1012
    %1679 = vmatpush1.bf16.msra.mxu0 %v1011
    %1680 = vmatprep.subr.bf16.mxu0 %v1016
    %1681 = vmatpush1.bf16.msra.mxu0 %v1015
    %1682 = vmatprep.mubr.bf16.mxu0 %v120
    %1683 = vmatmul.mubr.bf16.gmra.mrb[0].mxu0 %v119
    %v1684 = vpop.f32.mrb[0].mxu0
    %v1685 = vadd.f32 %v356, %v1684
    %v1686 = vpop.f32.mrb[0].mxu0
    %v1687 = vadd.f32 %v360, %v1686
    %v1688 = vpop.f32.mrb[0].mxu0
    %v1689 = vadd.f32 %v356, %v1688
    %v1690 = vpop.f32.mrb[0].mxu0
    %v1691 = vadd.f32 %v360, %v1690
    %1692 = vmatprep.mubr.bf16.mxu0 %v127
    %1693 = vmatmul.mubr.bf16.gmra.mrb[0].mxu0 %v126
    %v1694 = vpop.f32.mrb[0].mxu0
    %v1695 = vadd.f32 %v356, %v1694
    %v1696 = vpop.f32.mrb[0].mxu0
    %v1697 = vadd.f32 %v360, %v1696
    %v1698 = vpop.f32.mrb[0].mxu0
    %v1699 = vadd.f32 %v356, %v1698
    %v1700 = vpop.f32.mrb[0].mxu0
    %v1701 = vadd.f32 %v360, %v1700
    %1702 = vmatprep.mubr.bf16.mxu0 %v134
    %1703 = vmatmul.mubr.bf16.gmra.mrb[0].mxu0 %v133
    %v1704 = vpop.f32.mrb[0].mxu0
    %v1705 = vadd.f32 %v356, %v1704
    %v1706 = vpop.f32.mrb[0].mxu0
    %v1707 = vadd.f32 %v360, %v1706
    %v1708 = vpop.f32.mrb[0].mxu0
    %v1709 = vadd.f32 %v356, %v1708
    %v1710 = vpop.f32.mrb[0].mxu0
    %v1711 = vadd.f32 %v360, %v1710
    %1712 = vmatprep.mubr.bf16.mxu0 %v141
    %1713 = vmatmul.mubr.bf16.gmra.mrb[0].mxu0 %v140
    %v1714 = vpop.f32.mrb[0].mxu0
    %v1715 = vadd.f32 %v356, %v1714
    %v1716 = vpop.f32.mrb[0].mxu0
    %v1717 = vadd.f32 %v360, %v1716
    %v1718 = vpop.f32.mrb[0].mxu0
    %v1719 = vadd.f32 %v356, %v1718
    %v1720 = vpop.f32.mrb[0].mxu0
    %v1721 = vadd.f32 %v360, %v1720
    %1722 = vdwg.mxu0
    %1723 = vmatprep.subr.bf16.mxu0 %v1020
    %1724 = vmatpush1.bf16.msra.mxu0 %v1019
    %1725 = vmatprep.subr.bf16.mxu0 %v1024
    %1726 = vmatpush1.bf16.msra.mxu0 %v1023
    %1727 = vmatprep.subr.bf16.mxu0 %v1028
    %1728 = vmatpush1.bf16.msra.mxu0 %v1027
    %1729 = vmatprep.subr.bf16.mxu0 %v1032
    %1730 = vmatpush1.bf16.msra.mxu0 %v1031
    %1731 = vmatprep.subr.bf16.mxu0 %v1036
    %1732 = vmatpush1.bf16.msra.mxu0 %v1035
    %1733 = vmatprep.subr.bf16.mxu0 %v1040
    %1734 = vmatpush1.bf16.msra.mxu0 %v1039
    %1735 = vmatprep.subr.bf16.mxu0 %v1044
    %1736 = vmatpush1.bf16.msra.mxu0 %v1043
    %1737 = vmatprep.subr.bf16.mxu0 %v1048
    %1738 = vmatpush1.bf16.msra.mxu0 %v1047
    %1739 = vmatprep.subr.bf16.mxu0 %v1052
    %1740 = vmatpush1.bf16.msra.mxu0 %v1051
    %1741 = vmatprep.subr.bf16.mxu0 %v1056
    %1742 = vmatpush1.bf16.msra.mxu0 %v1055
    %1743 = vmatprep.subr.bf16.mxu0 %v1060
    %1744 = vmatpush1.bf16.msra.mxu0 %v1059
    %1745 = vmatprep.subr.bf16.mxu0 %v1064
    %1746 = vmatpush1.bf16.msra.mxu0 %v1063
    %1747 = vmatprep.subr.bf16.mxu0 %v1068
    %1748 = vmatpush1.bf16.msra.mxu0 %v1067
    %1749 = vmatprep.subr.bf16.mxu0 %v1072
    %1750 = vmatpush1.bf16.msra.mxu0 %v1071
    %1751 = vmatprep.subr.bf16.mxu0 %v1076
    %1752 = vmatpush1.bf16.msra.mxu0 %v1075
    %1753 = vmatprep.subr.bf16.mxu0 %v1080
    %1754 = vmatpush1.bf16.msra.mxu0 %v1079
    %1755 = vmatprep.mubr.bf16.mxu0 %v122
    %1756 = vmatmul.mubr.bf16.gmra.mrb[0].mxu0 %v121
    %v1757 = vpop.f32.mrb[0].mxu0
    %v1758 = vadd.f32 %v1685, %v1757
    %v1759 = vpop.f32.mrb[0].mxu0
    %v1760 = vadd.f32 %v1687, %v1759
    %v1761 = vpop.f32.mrb[0].mxu0
    %v1762 = vadd.f32 %v1689, %v1761
    %v1763 = vpop.f32.mrb[0].mxu0
    %v1764 = vadd.f32 %v1691, %v1763
    %1765 = vmatprep.mubr.bf16.mxu0 %v129
    %1766 = vmatmul.mubr.bf16.gmra.mrb[0].mxu0 %v128
    %v1767 = vpop.f32.mrb[0].mxu0
    %v1768 = vadd.f32 %v1695, %v1767
    %v1769 = vpop.f32.mrb[0].mxu0
    %v1770 = vadd.f32 %v1697, %v1769
    %v1771 = vpop.f32.mrb[0].mxu0
    %v1772 = vadd.f32 %v1699, %v1771
    %v1773 = vpop.f32.mrb[0].mxu0
    %v1774 = vadd.f32 %v1701, %v1773
    %1775 = vmatprep.mubr.bf16.mxu0 %v136
    %1776 = vmatmul.mubr.bf16.gmra.mrb[0].mxu0 %v135
    %v1777 = vpop.f32.mrb[0].mxu0
    %v1778 = vadd.f32 %v1705, %v1777
    %v1779 = vpop.f32.mrb[0].mxu0
    %v1780 = vadd.f32 %v1707, %v1779
    %v1781 = vpop.f32.mrb[0].mxu0
    %v1782 = vadd.f32 %v1709, %v1781
    %v1783 = vpop.f32.mrb[0].mxu0
    %v1784 = vadd.f32 %v1711, %v1783
    %1785 = vmatprep.mubr.bf16.mxu0 %v143
    %1786 = vmatmul.mubr.bf16.gmra.mrb[0].mxu0 %v142
    %v1787 = vpop.f32.mrb[0].mxu0
    %v1788 = vadd.f32 %v1715, %v1787
    %v1789 = vpop.f32.mrb[0].mxu0
    %v1790 = vadd.f32 %v1717, %v1789
    %v1791 = vpop.f32.mrb[0].mxu0
    %v1792 = vadd.f32 %v1719, %v1791
    %v1793 = vpop.f32.mrb[0].mxu0
    %v1794 = vadd.f32 %v1721, %v1793
    %1795 = vdwg.mxu0
    %1796 = vmatprep.subr.bf16.mxu0 %v1084
    %1797 = vmatpush1.bf16.msra.mxu0 %v1083
    %1798 = vmatprep.subr.bf16.mxu0 %v1088
    %1799 = vmatpush1.bf16.msra.mxu0 %v1087
    %1800 = vmatprep.subr.bf16.mxu0 %v1092
    %1801 = vmatpush1.bf16.msra.mxu0 %v1091
    %1802 = vmatprep.subr.bf16.mxu0 %v1096
    %1803 = vmatpush1.bf16.msra.mxu0 %v1095
    %1804 = vmatprep.subr.bf16.mxu0 %v1100
    %1805 = vmatpush1.bf16.msra.mxu0 %v1099
    %1806 = vmatprep.subr.bf16.mxu0 %v1104
    %1807 = vmatpush1.bf16.msra.mxu0 %v1103
    %1808 = vmatprep.subr.bf16.mxu0 %v1108
    %1809 = vmatpush1.bf16.msra.mxu0 %v1107
    %1810 = vmatprep.subr.bf16.mxu0 %v1112
    %1811 = vmatpush1.bf16.msra.mxu0 %v1111
    %1812 = vmatprep.subr.bf16.mxu0 %v1116
    %1813 = vmatpush1.bf16.msra.mxu0 %v1115
    %1814 = vmatprep.subr.bf16.mxu0 %v1120
    %1815 = vmatpush1.bf16.msra.mxu0 %v1119
    %1816 = vmatprep.subr.bf16.mxu0 %v1124
    %1817 = vmatpush1.bf16.msra.mxu0 %v1123
    %1818 = vmatprep.subr.bf16.mxu0 %v1128
    %1819 = vmatpush1.bf16.msra.mxu0 %v1127
    %1820 = vmatprep.subr.bf16.mxu0 %v1132
    %1821 = vmatpush1.bf16.msra.mxu0 %v1131
    %1822 = vmatprep.subr.bf16.mxu0 %v1136
    %1823 = vmatpush1.bf16.msra.mxu0 %v1135
    %1824 = vmatprep.subr.bf16.mxu0 %v1140
    %1825 = vmatpush1.bf16.msra.mxu0 %v1139
    %1826 = vmatprep.subr.bf16.mxu0 %v1144
    %1827 = vmatpush1.bf16.msra.mxu0 %v1143
    %1828 = vmatprep.mubr.bf16.mxu0 %v124
    %1829 = vmatmul.mubr.bf16.gmra.mrb[0].mxu0 %v123
    %v1830 = vpop.f32.mrb[0].mxu0
    %v1831 = vadd.f32 %v1758, %v1830
    %v1832 = vpop.f32.mrb[0].mxu0
    %v1833 = vadd.f32 %v1760, %v1832
    %v1834 = vpop.f32.mrb[0].mxu0
    %v1835 = vadd.f32 %v1762, %v1834
    %v1836 = vpop.f32.mrb[0].mxu0
    %v1837 = vadd.f32 %v1764, %v1836
    %1838 = vmatprep.mubr.bf16.mxu0 %v131
    %1839 = vmatmul.mubr.bf16.gmra.mrb[0].mxu0 %v130
    %v1840 = vpop.f32.mrb[0].mxu0
    %v1841 = vadd.f32 %v1768, %v1840
    %v1842 = vpop.f32.mrb[0].mxu0
    %v1843 = vadd.f32 %v1770, %v1842
    %v1844 = vpop.f32.mrb[0].mxu0
    %v1845 = vadd.f32 %v1772, %v1844
    %v1846 = vpop.f32.mrb[0].mxu0
    %v1847 = vadd.f32 %v1774, %v1846
    %1848 = vmatprep.mubr.bf16.mxu0 %v138
    %1849 = vmatmul.mubr.bf16.gmra.mrb[0].mxu0 %v137
    %v1850 = vpop.f32.mrb[0].mxu0
    %v1851 = vadd.f32 %v1778, %v1850
    %v1852 = vpop.f32.mrb[0].mxu0
    %v1853 = vadd.f32 %v1780, %v1852
    %v1854 = vpop.f32.mrb[0].mxu0
    %v1855 = vadd.f32 %v1782, %v1854
    %v1856 = vpop.f32.mrb[0].mxu0
    %v1857 = vadd.f32 %v1784, %v1856
    %1858 = vmatprep.mubr.bf16.mxu0 %v145
    %1859 = vmatmul.mubr.bf16.gmra.mrb[0].mxu0 %v144
    %v1860 = vpop.f32.mrb[0].mxu0
    %v1861 = vadd.f32 %v1788, %v1860
    %v1862 = vpop.f32.mrb[0].mxu0
    %v1863 = vadd.f32 %v1790, %v1862
    %v1864 = vpop.f32.mrb[0].mxu0
    %v1865 = vadd.f32 %v1792, %v1864
    %v1866 = vpop.f32.mrb[0].mxu0
    %v1867 = vadd.f32 %v1794, %v1866
    %1868 = vdwg.mxu0
    %1869 = vmatprep.subr.bf16.mxu0 %v1148
    %1870 = vmatpush1.bf16.msra.mxu0 %v1147
    %1871 = vmatprep.subr.bf16.mxu0 0
    %1872 = vmatpush1.bf16.msra.mxu0 0
    %1873 = vmatprep.subr.bf16.mxu0 0
    %1874 = vmatpush1.bf16.msra.mxu0 0
    %1875 = vmatprep.subr.bf16.mxu0 0
    %1876 = vmatpush1.bf16.msra.mxu0 0
    %1877 = vmatprep.subr.bf16.mxu0 0
    %1878 = vmatpush1.bf16.msra.mxu0 0
    %1879 = vmatprep.subr.bf16.mxu0 0
    %1880 = vmatpush1.bf16.msra.mxu0 0
    %1881 = vmatprep.subr.bf16.mxu0 0
    %1882 = vmatpush1.bf16.msra.mxu0 0
    %1883 = vmatprep.subr.bf16.mxu0 0
    %1884 = vmatpush1.bf16.msra.mxu0 0
    %1885 = vmatprep.subr.bf16.mxu0 0
    %1886 = vmatpush1.bf16.msra.mxu0 0
    %1887 = vmatprep.subr.bf16.mxu0 0
    %1888 = vmatpush1.bf16.msra.mxu0 0
    %1889 = vmatprep.subr.bf16.mxu0 0
    %1890 = vmatpush1.bf16.msra.mxu0 0
    %1891 = vmatprep.subr.bf16.mxu0 0
    %1892 = vmatpush1.bf16.msra.mxu0 0
    %1893 = vmatprep.subr.bf16.mxu0 0
    %1894 = vmatpush1.bf16.msra.mxu0 0
    %1895 = vmatprep.subr.bf16.mxu0 0
    %1896 = vmatpush1.bf16.msra.mxu0 0
    %1897 = vmatprep.subr.bf16.mxu0 0
    %1898 = vmatpush1.bf16.msra.mxu0 0
    %1899 = vmatprep.subr.bf16.mxu0 0
    %1900 = vmatpush1.bf16.msra.mxu0 0
    %1901 = vmatprep.mubr.bf16.mxu0 0
    %1902 = vmatmul.mubr.bf16.gmra.mrb[0].mxu0 %v1347
    %v1903 = vpop.f32.mrb[0].mxu0
    %v1904 = vadd.f32 %v1831, %v1903
    %v1905 = vpop.f32.mrb[0].mxu0
    %v1906 = vadd.f32 %v1833, %v1905
    %v1907 = vpop.f32.mrb[0].mxu0
    %v1908 = vadd.f32 %v1835, %v1907
    %v1909 = vpop.f32.mrb[0].mxu0
    %v1910 = vadd.f32 %v1837, %v1909
    %1911 = vmatprep.mubr.bf16.mxu0 0
    %1912 = vmatmul.mubr.bf16.gmra.mrb[0].mxu0 %v1350
    %v1913 = vpop.f32.mrb[0].mxu0
    %v1914 = vadd.f32 %v1841, %v1913
    %v1915 = vpop.f32.mrb[0].mxu0
    %v1916 = vadd.f32 %v1843, %v1915
    %v1917 = vpop.f32.mrb[0].mxu0
    %v1918 = vadd.f32 %v1845, %v1917
    %v1919 = vpop.f32.mrb[0].mxu0
    %v1920 = vadd.f32 %v1847, %v1919
    %1921 = vmatprep.mubr.bf16.mxu0 0
    %1922 = vmatmul.mubr.bf16.gmra.mrb[0].mxu0 %v1353
    %v1923 = vpop.f32.mrb[0].mxu0
    %v1924 = vadd.f32 %v1851, %v1923
    %v1925 = vpop.f32.mrb[0].mxu0
    %v1926 = vadd.f32 %v1853, %v1925
    %v1927 = vpop.f32.mrb[0].mxu0
    %v1928 = vadd.f32 %v1855, %v1927
    %v1929 = vpop.f32.mrb[0].mxu0
    %v1930 = vadd.f32 %v1857, %v1929
    %1931 = vmatprep.mubr.bf16.mxu0 0
    %1932 = vmatmul.mubr.bf16.gmra.mrb[0].mxu0 %v1356
    %v1933 = vpop.f32.mrb[0].mxu0
    %v1934 = vadd.f32 %v1861, %v1933
    %v1935 = vpop.f32.mrb[0].mxu0
    %v1936 = vadd.f32 %v1863, %v1935
    %v1937 = vpop.f32.mrb[0].mxu0
    %v1938 = vadd.f32 %v1865, %v1937
    %v1939 = vpop.f32.mrb[0].mxu0
    %v1940 = vadd.f32 %v1867, %v1939
    %1941 = vdwg.mxu0
    %v1942 = vmax.f32 %v1612, 0.0
    %v1943 = vmax.f32 %v1614, 0.0
    %v1944 = vmax.f32 %v1904, 0.0
    %v1945 = vmax.f32 %v1906, 0.0
    %v1946 = vmax.f32 %v1616, 0.0
    %v1947 = vmax.f32 %v1618, 0.0
    %v1948 = vmax.f32 %v1908, 0.0
    %v1949 = vmax.f32 %v1910, 0.0
    %v1950 = vmax.f32 %v1622, 0.0
    %v1951 = vmax.f32 %v1624, 0.0
    %v1952 = vmax.f32 %v1914, 0.0
    %v1953 = vmax.f32 %v1916, 0.0
    %v1954 = vmax.f32 %v1626, 0.0
    %v1955 = vmax.f32 %v1628, 0.0
    %v1956 = vmax.f32 %v1918, 0.0
    %v1957 = vmax.f32 %v1920, 0.0
    %v1958 = vmax.f32 %v1632, 0.0
    %v1959 = vmax.f32 %v1634, 0.0
    %v1960 = vmax.f32 %v1924, 0.0
    %v1961 = vmax.f32 %v1926, 0.0
    %v1962 = vmax.f32 %v1636, 0.0
    %v1963 = vmax.f32 %v1638, 0.0
    %v1964 = vmax.f32 %v1928, 0.0
    %v1965 = vmax.f32 %v1930, 0.0
    %v1966 = vmax.f32 %v1642, 0.0
    %v1967 = vmax.f32 %v1644, 0.0
    %v1968 = vmax.f32 %v1934, 0.0
    %v1969 = vmax.f32 %v1936, 0.0
    %v1970 = vmax.f32 %v1646, 0.0
    %v1971 = vmax.f32 %v1648, 0.0
    %v1972 = vmax.f32 %v1938, 0.0
    %v1973 = vmax.f32 %v1940, 0.0
    %v1974 = vpack.c.bf16 %v1946, %v1942
    %v1975 = vpack.c.bf16 %v1947, %v1943
    %v1976 = vpack.c.bf16 %v1948, %v1944
    %v1977 = vpack.c.bf16 %v1949, %v1945
    %v1978 = vpack.c.bf16 %v1954, %v1950
    %v1979 = vpack.c.bf16 %v1955, %v1951
    %v1980 = vpack.c.bf16 %v1956, %v1952
    %v1981 = vpack.c.bf16 %v1957, %v1953
    %v1982 = vpack.c.bf16 %v1962, %v1958
    %v1983 = vpack.c.bf16 %v1963, %v1959
    %v1984 = vpack.c.bf16 %v1964, %v1960
    %v1985 = vpack.c.bf16 %v1965, %v1961
    %v1986 = vpack.c.bf16 %v1970, %v1966
    %v1987 = vpack.c.bf16 %v1971, %v1967
    %v1988 = vpack.c.bf16 %v1972, %v1968
    %v1989 = vpack.c.bf16 %v1973, %v1969
    %v1990 = vld [vmem:[#allocation7] sm:$0xf]
    %v1991 = vld [vmem:[#allocation7 + $0x4] sm:$0xf]
    %v1992 = vld [vmem:[#allocation7 + $0x8] sm:$0xf]
    %v1993 = vld [vmem:[#allocation7 + $0xc] sm:$0xf]
    %v1994 = vld [vmem:[#allocation7 + $0x10] sm:$0xf]
    %v1995 = vld [vmem:[#allocation7 + $0x14] sm:$0xf]
    %v1996 = vld [vmem:[#allocation7 + $0x18] sm:$0xf]
    %v1997 = vld [vmem:[#allocation7 + $0x1c] sm:$0xf]
    %v1998 = vld [vmem:[#allocation7 + $0x20] sm:$0xf]
    %v1999 = vld [vmem:[#allocation7 + $0x24] sm:$0xf]
    %v2000 = vld [vmem:[#allocation7 + $0x28] sm:$0xf]
    %v2001 = vld [vmem:[#allocation7 + $0x2c] sm:$0xf]
    %v2002 = vld [vmem:[#allocation7 + $0x30] sm:$0xf]
    %v2003 = vld [vmem:[#allocation7 + $0x34] sm:$0xf]
    %v2004 = vld [vmem:[#allocation7 + $0x38] sm:$0xf]
    %v2005 = vld [vmem:[#allocation7 + $0x3c] sm:$0xf]
    %v2006 = vld [vmem:[#allocation7 + $0x40] sm:$0xf]
    %v2007 = vld [vmem:[#allocation7 + $0x44] sm:$0xf]
    %v2008 = vld [vmem:[#allocation7 + $0x48] sm:$0xf]
    %v2009 = vld [vmem:[#allocation7 + $0x4c] sm:$0xf]
    %v2010 = vld [vmem:[#allocation7 + $0x50] sm:$0xf]
    %v2011 = vld [vmem:[#allocation7 + $0x54] sm:$0xf]
    %v2012 = vld [vmem:[#allocation7 + $0x58] sm:$0xf]
    %v2013 = vld [vmem:[#allocation7 + $0x5c] sm:$0xf]
    %v2014 = vld [vmem:[#allocation7 + $0x60] sm:$0xf]
    %v2015 = vld [vmem:[#allocation7 + $0x64] sm:$0xf]
    %v2016 = vld [vmem:[#allocation7 + $0x68] sm:$0xf]
    %v2017 = vld [vmem:[#allocation7 + $0x6c] sm:$0xf]
    %v2018 = vld [vmem:[#allocation7 + $0x70] sm:$0xf]
    %v2019 = vld [vmem:[#allocation7 + $0x74] sm:$0xf]
    %v2020 = vld [vmem:[#allocation7 + $0x78] sm:$0xf]
    %v2021 = vld [vmem:[#allocation7 + $0x7c] sm:$0xf]
    %v2022 = vld [vmem:[#allocation7 + $0x80] sm:$0xf]
    %v2023 = vld [vmem:[#allocation7 + $0x84] sm:$0xf]
    %v2024 = vld [vmem:[#allocation7 + $0x88] sm:$0xf]
    %v2025 = vld [vmem:[#allocation7 + $0x8c] sm:$0xf]
    %v2026 = vld [vmem:[#allocation7 + $0x90] sm:$0xf]
    %v2027 = vld [vmem:[#allocation7 + $0x94] sm:$0xf]
    %v2028 = vld [vmem:[#allocation7 + $0x98] sm:$0xf]
    %v2029 = vld [vmem:[#allocation7 + $0x9c] sm:$0xf]
    %v2030 = vld [vmem:[#allocation7 + $0xa0] sm:$0xf]
    %v2031 = vld [vmem:[#allocation7 + $0xa4] sm:$0xf]
    %v2032 = vld [vmem:[#allocation7 + $0xa8] sm:$0xf]
    %v2033 = vld [vmem:[#allocation7 + $0xac] sm:$0xf]
    %v2034 = vld [vmem:[#allocation7 + $0xb0] sm:$0xf]
    %v2035 = vld [vmem:[#allocation7 + $0xb4] sm:$0xf]
    %v2036 = vld [vmem:[#allocation7 + $0xb8] sm:$0xf]
    %v2037 = vld [vmem:[#allocation7 + $0xbc] sm:$0xf]
    %v2038 = vld [vmem:[#allocation7 + $0xc0] sm:$0xf]
    %v2039 = vld [vmem:[#allocation7 + $0xc4] sm:$0xf]
    %v2040 = vld [vmem:[#allocation7 + $0xc8] sm:$0xf]
    %v2041 = vld [vmem:[#allocation7 + $0xcc] sm:$0xf]
    %v2042 = vld [vmem:[#allocation7 + $0xd0] sm:$0xf]
    %v2043 = vld [vmem:[#allocation7 + $0xd4] sm:$0xf]
    %v2044 = vld [vmem:[#allocation7 + $0xd8] sm:$0xf]
    %v2045 = vld [vmem:[#allocation7 + $0xdc] sm:$0xf]
    %v2046 = vld [vmem:[#allocation7 + $0xe0] sm:$0xf]
    %v2047 = vld [vmem:[#allocation7 + $0xe4] sm:$0xf]
    %v2048 = vld [vmem:[#allocation7 + $0xe8] sm:$0xf]
    %v2049 = vld [vmem:[#allocation7 + $0xec] sm:$0xf]
    %v2050 = vld [vmem:[#allocation7 + $0xf0] sm:$0xf]
    %v2051 = vld [vmem:[#allocation7 + $0xf4] sm:$0xf]
    %v2052 = vld [vmem:[#allocation7 + $0xf8] sm:$0xf]
    %v2053 = vld [vmem:[#allocation7 + $0xfc] sm:$0xf]
    %v2054 = vld [vmem:[%s4] sm:$0x1]
    %v2056 = vlaneseq
    %v2057 = vshrl.u32 %v2056, 7
    %v2058 = vsub.s32 0, %v2057
    %v2059 = vrot.slane %v2054, %v2058
    %v2125 = vunpack.c.l.b16 %v1990
    %v2126 = vunpack.c.l.b16 %v1991
    %v2127 = vunpack.c.l.b16 %v1992
    %v2128 = vunpack.c.l.b16 %v1993
    %v2129 = vunpack.c.l.b16 %v1994
    %v2130 = vunpack.c.l.b16 %v1995
    %v2131 = vunpack.c.l.b16 %v1996
    %v2132 = vunpack.c.l.b16 %v1997
    %v2133 = vunpack.c.l.b16 %v1998
    %v2134 = vunpack.c.l.b16 %v1999
    %v2135 = vunpack.c.l.b16 %v2000
    %v2136 = vunpack.c.l.b16 %v2001
    %v2137 = vunpack.c.l.b16 %v2002
    %v2138 = vunpack.c.l.b16 %v2003
    %v2139 = vunpack.c.l.b16 %v2004
    %v2140 = vunpack.c.l.b16 %v2005
    %v2141 = vunpack.c.l.b16 %v2006
    %v2142 = vunpack.c.l.b16 %v2007
    %v2143 = vunpack.c.l.b16 %v2008
    %v2144 = vunpack.c.l.b16 %v2009
    %v2145 = vunpack.c.l.b16 %v2010
    %v2146 = vunpack.c.l.b16 %v2011
    %v2147 = vunpack.c.l.b16 %v2012
    %v2148 = vunpack.c.l.b16 %v2013
    %v2149 = vunpack.c.l.b16 %v2014
    %v2150 = vunpack.c.l.b16 %v2015
    %v2151 = vunpack.c.l.b16 %v2016
    %v2152 = vunpack.c.l.b16 %v2017
    %v2153 = vunpack.c.l.b16 %v2018
    %v2154 = vunpack.c.l.b16 %v2019
    %v2155 = vunpack.c.l.b16 %v2020
    %v2156 = vunpack.c.l.b16 %v2021
    %v2157 = vunpack.c.l.b16 %v2022
    %v2158 = vunpack.c.l.b16 %v2023
    %v2159 = vunpack.c.l.b16 %v2024
    %v2160 = vunpack.c.l.b16 %v2025
    %v2161 = vunpack.c.l.b16 %v2026
    %v2162 = vunpack.c.l.b16 %v2027
    %v2163 = vunpack.c.l.b16 %v2028
    %v2164 = vunpack.c.l.b16 %v2029
    %v2165 = vunpack.c.l.b16 %v2030
    %v2166 = vunpack.c.l.b16 %v2031
    %v2167 = vunpack.c.l.b16 %v2032
    %v2168 = vunpack.c.l.b16 %v2033
    %v2169 = vunpack.c.l.b16 %v2034
    %v2170 = vunpack.c.l.b16 %v2035
    %v2171 = vunpack.c.l.b16 %v2036
    %v2172 = vunpack.c.l.b16 %v2037
    %v2173 = vunpack.c.l.b16 %v2038
    %v2174 = vunpack.c.l.b16 %v2039
    %v2175 = vunpack.c.l.b16 %v2040
    %v2176 = vunpack.c.l.b16 %v2041
    %v2177 = vunpack.c.l.b16 %v2042
    %v2178 = vunpack.c.l.b16 %v2043
    %v2179 = vunpack.c.l.b16 %v2044
    %v2180 = vunpack.c.l.b16 %v2045
    %v2181 = vunpack.c.l.b16 %v2046
    %v2182 = vunpack.c.l.b16 %v2047
    %v2183 = vunpack.c.l.b16 %v2048
    %v2184 = vunpack.c.l.b16 %v2049
    %v2185 = vunpack.c.l.b16 %v2050
    %v2186 = vunpack.c.l.b16 %v2051
    %v2187 = vunpack.c.l.b16 %v2052
    %v2188 = vunpack.c.l.b16 %v2053
    %v2189 = vpack.c.b16 %v2126, %v2125
    %v2190 = vpack.c.b16 %v2128, %v2127
    %v2191 = vpack.c.b16 %v2130, %v2129
    %v2192 = vpack.c.b16 %v2132, %v2131
    %v2193 = vpack.c.b16 %v2134, %v2133
    %v2194 = vpack.c.b16 %v2136, %v2135
    %v2195 = vpack.c.b16 %v2138, %v2137
    %v2196 = vpack.c.b16 %v2140, %v2139
    %v2197 = vpack.c.b16 %v2142, %v2141
    %v2198 = vpack.c.b16 %v2144, %v2143
    %v2199 = vpack.c.b16 %v2146, %v2145
    %v2200 = vpack.c.b16 %v2148, %v2147
    %v2201 = vpack.c.b16 %v2150, %v2149
    %v2202 = vpack.c.b16 %v2152, %v2151
    %v2203 = vpack.c.b16 %v2154, %v2153
    %v2204 = vpack.c.b16 %v2156, %v2155
    %v2205 = vpack.c.b16 %v2158, %v2157
    %v2206 = vpack.c.b16 %v2160, %v2159
    %v2207 = vpack.c.b16 %v2162, %v2161
    %v2208 = vpack.c.b16 %v2164, %v2163
    %v2209 = vpack.c.b16 %v2166, %v2165
    %v2210 = vpack.c.b16 %v2168, %v2167
    %v2211 = vpack.c.b16 %v2170, %v2169
    %v2212 = vpack.c.b16 %v2172, %v2171
    %v2213 = vpack.c.b16 %v2174, %v2173
    %v2214 = vpack.c.b16 %v2176, %v2175
    %v2215 = vpack.c.b16 %v2178, %v2177
    %v2216 = vpack.c.b16 %v2180, %v2179
    %v2217 = vpack.c.b16 %v2182, %v2181
    %v2218 = vpack.c.b16 %v2184, %v2183
    %v2219 = vpack.c.b16 %v2186, %v2185
    %v2220 = vpack.c.b16 %v2188, %v2187
    %2253 = vmatprep.subr.bf16.mxu0 0
    %2254 = vmatpush1.bf16.msra.mxu0 %v2189
    %2255 = vmatprep.subr.bf16.mxu0 0
    %2256 = vmatpush1.bf16.msra.mxu0 %v2190
    %2257 = vmatprep.subr.bf16.mxu0 0
    %2258 = vmatpush1.bf16.msra.mxu0 %v2191
    %2259 = vmatprep.subr.bf16.mxu0 0
    %2260 = vmatpush1.bf16.msra.mxu0 %v2192
    %2261 = vmatprep.subr.bf16.mxu0 0
    %2262 = vmatpush1.bf16.msra.mxu0 %v2193
    %2263 = vmatprep.subr.bf16.mxu0 0
    %2264 = vmatpush1.bf16.msra.mxu0 %v2194
    %2265 = vmatprep.subr.bf16.mxu0 0
    %2266 = vmatpush1.bf16.msra.mxu0 %v2195
    %2267 = vmatprep.subr.bf16.mxu0 0
    %2268 = vmatpush1.bf16.msra.mxu0 %v2196
    %2269 = vmatprep.subr.bf16.mxu0 0
    %2270 = vmatpush1.bf16.msra.mxu0 %v2197
    %2271 = vmatprep.subr.bf16.mxu0 0
    %2272 = vmatpush1.bf16.msra.mxu0 %v2198
    %2273 = vmatprep.subr.bf16.mxu0 0
    %2274 = vmatpush1.bf16.msra.mxu0 %v2199
    %2275 = vmatprep.subr.bf16.mxu0 0
    %2276 = vmatpush1.bf16.msra.mxu0 %v2200
    %2277 = vmatprep.subr.bf16.mxu0 0
    %2278 = vmatpush1.bf16.msra.mxu0 %v2201
    %2279 = vmatprep.subr.bf16.mxu0 0
    %2280 = vmatpush1.bf16.msra.mxu0 %v2202
    %2281 = vmatprep.subr.bf16.mxu0 0
    %2282 = vmatpush1.bf16.msra.mxu0 %v2203
    %2283 = vmatprep.subr.bf16.mxu0 0
    %2284 = vmatpush1.bf16.msra.mxu0 %v2204
    %2285 = vmatprep.mubr.bf16.mxu0 %v1975
    %2286 = vmatmul.mubr.bf16.gmra.mrb[0].mxu0 %v1974
    %v2287 = vpop.f32.mrb[0].mxu0
    %v2288 = vadd.f32 %v2059, %v2287
    %v2289 = vpop.f32.mrb[0].mxu0
    %v2290 = vpop.f32.mrb[0].mxu0
    %v2291 = vadd.f32 %v2059, %v2290
    %v2292 = vpop.f32.mrb[0].mxu0
    %2293 = vmatprep.mubr.bf16.mxu0 %v1979
    %2294 = vmatmul.mubr.bf16.gmra.mrb[0].mxu0 %v1978
    %v2295 = vpop.f32.mrb[0].mxu0
    %v2296 = vadd.f32 %v2059, %v2295
    %v2297 = vpop.f32.mrb[0].mxu0
    %v2298 = vpop.f32.mrb[0].mxu0
    %v2299 = vadd.f32 %v2059, %v2298
    %v2300 = vpop.f32.mrb[0].mxu0
    %2301 = vmatprep.mubr.bf16.mxu0 %v1983
    %2302 = vmatmul.mubr.bf16.gmra.mrb[0].mxu0 %v1982
    %v2303 = vpop.f32.mrb[0].mxu0
    %v2304 = vadd.f32 %v2059, %v2303
    %v2305 = vpop.f32.mrb[0].mxu0
    %v2306 = vpop.f32.mrb[0].mxu0
    %v2307 = vadd.f32 %v2059, %v2306
    %v2308 = vpop.f32.mrb[0].mxu0
    %2309 = vmatprep.mubr.bf16.mxu0 %v1987
    %2310 = vmatmul.mubr.bf16.gmra.mrb[0].mxu0 %v1986
    %v2311 = vpop.f32.mrb[0].mxu0
    %v2312 = vadd.f32 %v2059, %v2311
    %v2313 = vpop.f32.mrb[0].mxu0
    %v2314 = vpop.f32.mrb[0].mxu0
    %v2315 = vadd.f32 %v2059, %v2314
    %v2316 = vpop.f32.mrb[0].mxu0
    %2317 = vdwg.mxu0
    %2318 = vmatprep.subr.bf16.mxu0 0
    %2319 = vmatpush1.bf16.msra.mxu0 %v2205
    %2320 = vmatprep.subr.bf16.mxu0 0
    %2321 = vmatpush1.bf16.msra.mxu0 %v2206
    %2322 = vmatprep.subr.bf16.mxu0 0
    %2323 = vmatpush1.bf16.msra.mxu0 %v2207
    %2324 = vmatprep.subr.bf16.mxu0 0
    %2325 = vmatpush1.bf16.msra.mxu0 %v2208
    %2326 = vmatprep.subr.bf16.mxu0 0
    %2327 = vmatpush1.bf16.msra.mxu0 %v2209
    %2328 = vmatprep.subr.bf16.mxu0 0
    %2329 = vmatpush1.bf16.msra.mxu0 %v2210
    %2330 = vmatprep.subr.bf16.mxu0 0
    %2331 = vmatpush1.bf16.msra.mxu0 %v2211
    %2332 = vmatprep.subr.bf16.mxu0 0
    %2333 = vmatpush1.bf16.msra.mxu0 %v2212
    %2334 = vmatprep.subr.bf16.mxu0 0
    %2335 = vmatpush1.bf16.msra.mxu0 %v2213
    %2336 = vmatprep.subr.bf16.mxu0 0
    %2337 = vmatpush1.bf16.msra.mxu0 %v2214
    %2338 = vmatprep.subr.bf16.mxu0 0
    %2339 = vmatpush1.bf16.msra.mxu0 %v2215
    %2340 = vmatprep.subr.bf16.mxu0 0
    %2341 = vmatpush1.bf16.msra.mxu0 %v2216
    %2342 = vmatprep.subr.bf16.mxu0 0
    %2343 = vmatpush1.bf16.msra.mxu0 %v2217
    %2344 = vmatprep.subr.bf16.mxu0 0
    %2345 = vmatpush1.bf16.msra.mxu0 %v2218
    %2346 = vmatprep.subr.bf16.mxu0 0
    %2347 = vmatpush1.bf16.msra.mxu0 %v2219
    %2348 = vmatprep.subr.bf16.mxu0 0
    %2349 = vmatpush1.bf16.msra.mxu0 %v2220
    %2350 = vmatprep.mubr.bf16.mxu0 %v1977
    %2351 = vmatmul.mubr.bf16.gmra.mrb[0].mxu0 %v1976
    %v2352 = vpop.f32.mrb[0].mxu0
    %v2353 = vadd.f32 %v2288, %v2352
    %v2354 = vpop.f32.mrb[0].mxu0
    %v2355 = vpop.f32.mrb[0].mxu0
    %v2356 = vadd.f32 %v2291, %v2355
    %v2357 = vpop.f32.mrb[0].mxu0
    %2358 = vmatprep.mubr.bf16.mxu0 %v1981
    %2359 = vmatmul.mubr.bf16.gmra.mrb[0].mxu0 %v1980
    %v2360 = vpop.f32.mrb[0].mxu0
    %v2361 = vadd.f32 %v2296, %v2360
    %v2362 = vpop.f32.mrb[0].mxu0
    %v2363 = vpop.f32.mrb[0].mxu0
    %v2364 = vadd.f32 %v2299, %v2363
    %v2365 = vpop.f32.mrb[0].mxu0
    %2366 = vmatprep.mubr.bf16.mxu0 %v1985
    %2367 = vmatmul.mubr.bf16.gmra.mrb[0].mxu0 %v1984
    %v2368 = vpop.f32.mrb[0].mxu0
    %v2369 = vadd.f32 %v2304, %v2368
    %v2370 = vpop.f32.mrb[0].mxu0
    %v2371 = vpop.f32.mrb[0].mxu0
    %v2372 = vadd.f32 %v2307, %v2371
    %v2373 = vpop.f32.mrb[0].mxu0
    %2374 = vmatprep.mubr.bf16.mxu0 %v1989
    %2375 = vmatmul.mubr.bf16.gmra.mrb[0].mxu0 %v1988
    %v2376 = vpop.f32.mrb[0].mxu0
    %v2377 = vadd.f32 %v2312, %v2376
    %v2378 = vpop.f32.mrb[0].mxu0
    %v2379 = vpop.f32.mrb[0].mxu0
    %v2380 = vadd.f32 %v2315, %v2379
    %v2381 = vpop.f32.mrb[0].mxu0
    %2382 = vdwg.mxu0
    %2383 = vst [vmem:[#allocation8] sm:$0xff] %v2353
    %2384 = vst [vmem:[#allocation8 + $0x8] sm:$0xff] %v2356
    %2385 = vst [vmem:[#allocation8 + $0x10] sm:$0xff] %v2361
    %2386 = vst [vmem:[#allocation8 + $0x18] sm:$0xff] %v2364
    %2387 = vst [vmem:[#allocation8 + $0x20] sm:$0xff] %v2369
    %2388 = vst [vmem:[#allocation8 + $0x28] sm:$0xff] %v2372
    %2389 = vst [vmem:[#allocation8 + $0x30] sm:$0xff] %v2377
    %2390 = vst [vmem:[#allocation8 + $0x38] sm:$0xff] %v2380
    // Predicated region
    $region34: #{tpu_custom_call.1} parent=1 // pred_check
      _
    $region35: #{tpu_custom_call.1} parent=1 // pred_check_branch
      %2392 = sbr.rel (0) target = $region37
    $region36: #{tpu_custom_call.1} parent=1 // pred_region
      %s2394 = ssub.s32 1024, 1024
      %2395 = vsyncadd [#allocation4], %s2394
      %s2396 = sshll.u32 [#allocation8], 4
      %s2397 = int_to_ptr.vmem [resolvable:$true] %s2396
      %2402 = dma.vmem_to_hbm [thread:$0]  %s2397, 1024, %s5, [#allocation4], 128, 128, 8
    $region37: #{tpu_custom_call.1} parent=1 // pred_fallthru
      _
    // Predicated region
    $region38: #{tpu_custom_call.1} parent=1 // pred_check
      _
    $region39: #{tpu_custom_call.1} parent=1 // pred_check_branch
      %2404 = sbr.rel (0) target = $region41
    $region40: #{tpu_custom_call.1} parent=1 // pred_region
      %2405 = dma.done [#allocation4], 1024
    $region41: #{tpu_custom_call.1} parent=1 // pred_fallthru
      _
    %2406 = vsyncpa [#allocation3], 1
    %2407 = vsyncpa [#allocation6], 1
    %2408 = vsyncpa [#allocation4], 1

</llo_original>
